<compile_context>
chip_gen: v7x
topology: tpu7x:2x2x1
jax: 0.10.0
libtpu: 0.0.40
codegen_flags: <defaults>
</compile_context>

<pallas_src>
import numpy as np
import jax
import jax.numpy as jnp
from jax.experimental import pallas as pl
from jax.experimental.pallas import tpu as pltpu


def _dft_matrix(n):
    omega = np.exp(-2j * np.pi / n)
    j, k = np.meshgrid(np.arange(n), np.arange(n))
    return np.power(omega, j * k) / np.sqrt(n)


def _make_kernel(S, W, TP, a_sym, b_sym):
    """a_sym / b_sym: numpy (S,S) real/imag of F_sym, baked in as constants."""
    EPS = 1e-12

    def kernel(x_ref, fur_ref, fui_ref, rhs1_ref, rhs2_ref, out_ref):
        # x_ref: (S, TP, W)   out_ref: (S, TP, 2W)   constants in VMEM.
        fur = fur_ref[...]          # (W, W)   Re(F_sub)
        fui = fui_ref[...]          # (W, W)   Im(F_sub)
        rhs1 = rhs1_ref[...]        # (W, 2W)  [Re(F_sub)^T | -Im(F_sub)^T]
        rhs2 = rhs2_ref[...]        # (W, 2W)  [Im(F_sub)^T |  Re(F_sub)^T]

        def dot(a, b):
            return jnp.dot(a, b, preferred_element_type=jnp.float32)

        # ---- stage 1: Z_t = x_t @ F_sub  (x real), per symbol -> MXU ----
        zr, zi = [], []
        for t in range(S):
            xt = x_ref[t]                       # (TP, W), no relayout
            zr.append(dot(xt, fur))
            zi.append(dot(xt, fui))

        # ---- stage 2+3: X = F_sym @ Z  (unrolled VPU MAC over S), M = |X|^2 ----
        m = []
        for s in range(S):
            xr_s, xi_s = None, None
            for t in range(S):
                a = float(a_sym[s, t])
                b = float(b_sym[s, t])
                if abs(a) > EPS:
                    xr_s = a * zr[t] if xr_s is None else xr_s + a * zr[t]
                    xi_s = a * zi[t] if xi_s is None else xi_s + a * zi[t]
                if abs(b) > EPS:
                    xr_s = -b * zi[t] if xr_s is None else xr_s - b * zi[t]
                    xi_s = b * zr[t] if xi_s is None else xi_s + b * zr[t]
            if xr_s is None:
                xr_s = jnp.zeros((TP, W), jnp.float32)
            if xi_s is None:
                xi_s = jnp.zeros((TP, W), jnp.float32)
            m.append(xr_s * xr_s + xi_s * xi_s)

        # ---- stage 4: A = F_sym^H @ M  (M real, unrolled VPU MAC) ----
        # ---- stage 5: Out = A @ F_sub^H via block-real packed RHS -> MXU ----
        for s in range(S):
            ar_s, ai_s = None, None
            for t in range(S):
                a = float(a_sym[t, s])          # F_sym^H[s,t] = conj(F_sym[t,s])
                b = float(b_sym[t, s])
                if abs(a) > EPS:
                    ar_s = a * m[t] if ar_s is None else ar_s + a * m[t]
                if abs(b) > EPS:
                    ai_s = -b * m[t] if ai_s is None else ai_s - b * m[t]
            if ar_s is None:
                out_s = jnp.zeros((TP, 2 * W), jnp.float32)
            else:
                out_s = dot(ar_s, rhs1)
            if ai_s is not None:
                out_s = out_s + dot(ai_s, rhs2)
            out_ref[s] = out_s                  # (TP, 2W) = [Re | Im], one store

    return kernel


def symbol_subcarrier_autocorrelation(x, f_sym, f_sub):
    """x: (N, S, TXH, TXW, W) float32; f_sym (S,S), f_sub (W,W) numpy complex.
    Returns complex64 array of shape (N, S, TXH, TXW, W)."""
    N, S, TXH, TXW, W = x.shape
    P = TXH * TXW
    x4 = x.reshape(N, S, P, W).astype(jnp.float32)       # contiguous view

    a_sym = np.real(np.asarray(f_sym)).astype(np.float64)
    b_sym = np.imag(np.asarray(f_sym)).astype(np.float64)
    fur = np.real(np.asarray(f_sub)).astype(np.float32)
    fui = np.imag(np.asarray(f_sub)).astype(np.float32)
    # block-real packing for the final complex matmul:
    #   [Re | Im] = Ar @ [fur^T | -fui^T] + Ai @ [fui^T | fur^T]
    rhs1 = np.concatenate([fur.T, -fui.T], axis=1)        # (W, 2W)
    rhs2 = np.concatenate([fui.T, fur.T], axis=1)         # (W, 2W)

    # P-tile: prefer a multiple of 8 dividing P (capped at 128 so blocks fit
    # comfortably in v5e's 16 MiB / v7x's 32 MiB default scoped VMEM);
    # otherwise take the full P axis (legal: block dim equals array dim).
    TP = P
    for cand in (128, 64, 32, 16, 8):
        if P % cand == 0:
            TP = cand
            break
    grid = (N, P // TP)       # N >= 2 in practice -> >=2 parallel steps (v7x)

    kernel = _make_kernel(S, W, TP, a_sym, b_sym)

    B = N * P
    cost = pl.CostEstimate(
        flops=int(S * B * W * (12 * W + 12 * S + 3)),
        transcendentals=0,
        bytes_accessed=int(4 * (3 * S * B * W + 6 * W * W)),
    )

    const_spec_w = pl.BlockSpec((W, W), lambda n, p: (0, 0))
    const_spec_2w = pl.BlockSpec((W, 2 * W), lambda n, p: (0, 0))

    out_packed = pl.pallas_call(
        kernel,
        out_shape=jax.ShapeDtypeStruct((N, S, P, 2 * W), jnp.float32),
        grid_spec=pltpu.PrefetchScalarGridSpec(
            num_scalar_prefetch=0,
            grid=grid,
            in_specs=[
                pl.BlockSpec((None, S, TP, W), lambda n, p: (n, 0, p, 0)),
                const_spec_w, const_spec_w,     # Re/Im(F_sub)
                const_spec_2w, const_spec_2w,   # packed F_sub^H blocks
            ],
            out_specs=pl.BlockSpec((None, S, TP, 2 * W),
                                   lambda n, p: (n, 0, p, 0)),
        ),
        compiler_params=pltpu.CompilerParams(
            dimension_semantics=("parallel", "parallel")),
        cost_estimate=cost,
    )(x4, jnp.asarray(fur), jnp.asarray(fui),
      jnp.asarray(rhs1), jnp.asarray(rhs2))

    out = jax.lax.complex(out_packed[..., :W], out_packed[..., W:])
    return out.reshape(N, S, TXH, TXW, W)


def _reference(x, f_sym, f_sub):
    # numpy reference mirroring the PyTorch forward
    N, S, TXH, TXW, W = x.shape
    xr = x.reshape(N, S, TXH * TXW, W).transpose(0, 2, 1, 3).astype(np.complex64)
    X = np.matmul(f_sym, xr)
    X = np.matmul(X, f_sub)
    M = (np.abs(X) ** 2).astype(np.complex64)
    X = np.matmul(f_sym.conj().T, M)
    X = np.matmul(X, f_sub.conj().T)
    X = X.transpose(0, 2, 1, 3).reshape(N, S, TXH, TXW, W)
    return X


if __name__ == "__main__":
    num_symbols, num_subcarriers = 5, 33
    N, TXH, TXW = 2, 2, 2

    key = jax.random.PRNGKey(0)
    x = jax.random.normal(
        key, (N, num_symbols, TXH, TXW, num_subcarriers), dtype=jnp.float32)

    # deterministic parameter init (same construction as the PyTorch __init__)
    f_sym = _dft_matrix(num_symbols).astype(np.complex64)
    f_sub = _dft_matrix(num_subcarriers).astype(np.complex64)

    out = symbol_subcarrier_autocorrelation(x, f_sym, f_sub)
    out = jax.block_until_ready(out)

    ref = _reference(np.asarray(x), f_sym, f_sub)
    np.testing.assert_allclose(np.asarray(out), ref, rtol=5e-2, atol=5e-2)

    print("KERNEL_OK")
</pallas_src>

<mosaic_0001>
module attributes {stable_mosaic.version = 11 : i64} {
  func.func @kernel(%arg0: i32, %arg1: i32, %arg2: memref<1x5x4x33xf32, #tpu.memory_space<vmem>>, %arg3: memref<33x33xf32, #tpu.memory_space<vmem>>, %arg4: memref<33x33xf32, #tpu.memory_space<vmem>>, %arg5: memref<33x66xf32, #tpu.memory_space<vmem>>, %arg6: memref<33x66xf32, #tpu.memory_space<vmem>>, %arg7: memref<1x5x4x66xf32, #tpu.memory_space<vmem>>) attributes {dimension_semantics = [#tpu.dimension_semantics<parallel>, #tpu.dimension_semantics<parallel>], iteration_bounds = array<i64: 2, 1>, scalar_prefetch = 0 : i64, scratch_operands = 0 : i64, tpu.core_type = #tpu.core_type<tc>, window_params = [{transform_indices = @transform_0, window_bounds = array<i64: 1, 5, 4, 33>}, {pipeline_mode = #tpu.pipeline_mode<synchronous>, transform_indices = @transform_1, window_bounds = array<i64: 33, 33>}, {pipeline_mode = #tpu.pipeline_mode<synchronous>, transform_indices = @transform_2, window_bounds = array<i64: 33, 33>}, {pipeline_mode = #tpu.pipeline_mode<synchronous>, transform_indices = @transform_3, window_bounds = array<i64: 33, 66>}, {pipeline_mode = #tpu.pipeline_mode<synchronous>, transform_indices = @transform_4, window_bounds = array<i64: 33, 66>}, {transform_indices = @transform_5, window_bounds = array<i64: 1, 5, 4, 66>}]} {
    %c0 = arith.constant 0 : index
    %c0_0 = arith.constant 0 : index
    %0 = vector.load %arg3[%c0, %c0_0] : memref<33x33xf32, #tpu.memory_space<vmem>>, vector<33x33xf32>
    %c0_1 = arith.constant 0 : index
    %c0_2 = arith.constant 0 : index
    %1 = vector.load %arg4[%c0_1, %c0_2] : memref<33x33xf32, #tpu.memory_space<vmem>>, vector<33x33xf32>
    %c0_3 = arith.constant 0 : index
    %c0_4 = arith.constant 0 : index
    %2 = vector.load %arg5[%c0_3, %c0_4] : memref<33x66xf32, #tpu.memory_space<vmem>>, vector<33x66xf32>
    %c0_5 = arith.constant 0 : index
    %c0_6 = arith.constant 0 : index
    %3 = vector.load %arg6[%c0_5, %c0_6] : memref<33x66xf32, #tpu.memory_space<vmem>>, vector<33x66xf32>
    %c0_7 = arith.constant 0 : index
    %c0_8 = arith.constant 0 : index
    %c0_9 = arith.constant 0 : index
    %c0_10 = arith.constant 0 : index
    %4 = vector.load %arg2[%c0_7, %c0_8, %c0_9, %c0_10] : memref<1x5x4x33xf32, #tpu.memory_space<vmem>>, vector<1x1x4x33xf32>
    %5 = vector.shape_cast %4 : vector<1x1x4x33xf32> to vector<4x33xf32>
    %cst = arith.constant dense<0.000000e+00> : vector<4x33xf32>
    %6 = tpu.matmul %5, %0, %cst {dimension_numbers = #tpu.dot_dimension_numbers<[1], [0], [0], [1], [0, 0, 1, 1], [], []>} : vector<4x33xf32>, vector<33x33xf32>, vector<4x33xf32> -> vector<4x33xf32>
    %cst_11 = arith.constant dense<0.000000e+00> : vector<4x33xf32>
    %7 = tpu.matmul %5, %1, %cst_11 {dimension_numbers = #tpu.dot_dimension_numbers<[1], [0], [0], [1], [0, 0, 1, 1], [], []>} : vector<4x33xf32>, vector<33x33xf32>, vector<4x33xf32> -> vector<4x33xf32>
    %c0_12 = arith.constant 0 : index
    %c1 = arith.constant 1 : index
    %c0_13 = arith.constant 0 : index
    %c0_14 = arith.constant 0 : index
    %8 = vector.load %arg2[%c0_12, %c1, %c0_13, %c0_14] : memref<1x5x4x33xf32, #tpu.memory_space<vmem>>, vector<1x1x4x33xf32>
    %9 = vector.shape_cast %8 : vector<1x1x4x33xf32> to vector<4x33xf32>
    %cst_15 = arith.constant dense<0.000000e+00> : vector<4x33xf32>
    %10 = tpu.matmul %9, %0, %cst_15 {dimension_numbers = #tpu.dot_dimension_numbers<[1], [0], [0], [1], [0, 0, 1, 1], [], []>} : vector<4x33xf32>, vector<33x33xf32>, vector<4x33xf32> -> vector<4x33xf32>
    %cst_16 = arith.constant dense<0.000000e+00> : vector<4x33xf32>
    %11 = tpu.matmul %9, %1, %cst_16 {dimension_numbers = #tpu.dot_dimension_numbers<[1], [0], [0], [1], [0, 0, 1, 1], [], []>} : vector<4x33xf32>, vector<33x33xf32>, vector<4x33xf32> -> vector<4x33xf32>
    %c0_17 = arith.constant 0 : index
    %c2 = arith.constant 2 : index
    %c0_18 = arith.constant 0 : index
    %c0_19 = arith.constant 0 : index
    %12 = vector.load %arg2[%c0_17, %c2, %c0_18, %c0_19] : memref<1x5x4x33xf32, #tpu.memory_space<vmem>>, vector<1x1x4x33xf32>
    %13 = vector.shape_cast %12 : vector<1x1x4x33xf32> to vector<4x33xf32>
    %cst_20 = arith.constant dense<0.000000e+00> : vector<4x33xf32>
    %14 = tpu.matmul %13, %0, %cst_20 {dimension_numbers = #tpu.dot_dimension_numbers<[1], [0], [0], [1], [0, 0, 1, 1], [], []>} : vector<4x33xf32>, vector<33x33xf32>, vector<4x33xf32> -> vector<4x33xf32>
    %cst_21 = arith.constant dense<0.000000e+00> : vector<4x33xf32>
    %15 = tpu.matmul %13, %1, %cst_21 {dimension_numbers = #tpu.dot_dimension_numbers<[1], [0], [0], [1], [0, 0, 1, 1], [], []>} : vector<4x33xf32>, vector<33x33xf32>, vector<4x33xf32> -> vector<4x33xf32>
    %c0_22 = arith.constant 0 : index
    %c3 = arith.constant 3 : index
    %c0_23 = arith.constant 0 : index
    %c0_24 = arith.constant 0 : index
    %16 = vector.load %arg2[%c0_22, %c3, %c0_23, %c0_24] : memref<1x5x4x33xf32, #tpu.memory_space<vmem>>, vector<1x1x4x33xf32>
    %17 = vector.shape_cast %16 : vector<1x1x4x33xf32> to vector<4x33xf32>
    %cst_25 = arith.constant dense<0.000000e+00> : vector<4x33xf32>
    %18 = tpu.matmul %17, %0, %cst_25 {dimension_numbers = #tpu.dot_dimension_numbers<[1], [0], [0], [1], [0, 0, 1, 1], [], []>} : vector<4x33xf32>, vector<33x33xf32>, vector<4x33xf32> -> vector<4x33xf32>
    %cst_26 = arith.constant dense<0.000000e+00> : vector<4x33xf32>
    %19 = tpu.matmul %17, %1, %cst_26 {dimension_numbers = #tpu.dot_dimension_numbers<[1], [0], [0], [1], [0, 0, 1, 1], [], []>} : vector<4x33xf32>, vector<33x33xf32>, vector<4x33xf32> -> vector<4x33xf32>
    %c0_27 = arith.constant 0 : index
    %c4 = arith.constant 4 : index
    %c0_28 = arith.constant 0 : index
    %c0_29 = arith.constant 0 : index
    %20 = vector.load %arg2[%c0_27, %c4, %c0_28, %c0_29] : memref<1x5x4x33xf32, #tpu.memory_space<vmem>>, vector<1x1x4x33xf32>
    %21 = vector.shape_cast %20 : vector<1x1x4x33xf32> to vector<4x33xf32>
    %cst_30 = arith.constant dense<0.000000e+00> : vector<4x33xf32>
    %22 = tpu.matmul %21, %0, %cst_30 {dimension_numbers = #tpu.dot_dimension_numbers<[1], [0], [0], [1], [0, 0, 1, 1], [], []>} : vector<4x33xf32>, vector<33x33xf32>, vector<4x33xf32> -> vector<4x33xf32>
    %cst_31 = arith.constant dense<0.000000e+00> : vector<4x33xf32>
    %23 = tpu.matmul %21, %1, %cst_31 {dimension_numbers = #tpu.dot_dimension_numbers<[1], [0], [0], [1], [0, 0, 1, 1], [], []>} : vector<4x33xf32>, vector<33x33xf32>, vector<4x33xf32> -> vector<4x33xf32>
    %cst_32 = arith.constant 0.44721359 : f32
    %24 = vector.broadcast %cst_32 : f32 to vector<4x33xf32>
    %25 = arith.mulf %24, %6 : vector<4x33xf32>
    %cst_33 = arith.constant 0.44721359 : f32
    %26 = vector.broadcast %cst_33 : f32 to vector<4x33xf32>
    %27 = arith.mulf %26, %7 : vector<4x33xf32>
    %cst_34 = arith.constant 0.44721359 : f32
    %28 = vector.broadcast %cst_34 : f32 to vector<4x33xf32>
    %29 = arith.mulf %28, %10 : vector<4x33xf32>
    %30 = arith.addf %25, %29 : vector<4x33xf32>
    %cst_35 = arith.constant 0.44721359 : f32
    %31 = vector.broadcast %cst_35 : f32 to vector<4x33xf32>
    %32 = arith.mulf %31, %11 : vector<4x33xf32>
    %33 = arith.addf %27, %32 : vector<4x33xf32>
    %cst_36 = arith.constant 0.44721359 : f32
    %34 = vector.broadcast %cst_36 : f32 to vector<4x33xf32>
    %35 = arith.mulf %34, %14 : vector<4x33xf32>
    %36 = arith.addf %30, %35 : vector<4x33xf32>
    %cst_37 = arith.constant 0.44721359 : f32
    %37 = vector.broadcast %cst_37 : f32 to vector<4x33xf32>
    %38 = arith.mulf %37, %15 : vector<4x33xf32>
    %39 = arith.addf %33, %38 : vector<4x33xf32>
    %cst_38 = arith.constant 0.44721359 : f32
    %40 = vector.broadcast %cst_38 : f32 to vector<4x33xf32>
    %41 = arith.mulf %40, %18 : vector<4x33xf32>
    %42 = arith.addf %36, %41 : vector<4x33xf32>
    %cst_39 = arith.constant 0.44721359 : f32
    %43 = vector.broadcast %cst_39 : f32 to vector<4x33xf32>
    %44 = arith.mulf %43, %19 : vector<4x33xf32>
    %45 = arith.addf %39, %44 : vector<4x33xf32>
    %cst_40 = arith.constant 0.44721359 : f32
    %46 = vector.broadcast %cst_40 : f32 to vector<4x33xf32>
    %47 = arith.mulf %46, %22 : vector<4x33xf32>
    %48 = arith.addf %42, %47 : vector<4x33xf32>
    %cst_41 = arith.constant 0.44721359 : f32
    %49 = vector.broadcast %cst_41 : f32 to vector<4x33xf32>
    %50 = arith.mulf %49, %23 : vector<4x33xf32>
    %51 = arith.addf %45, %50 : vector<4x33xf32>
    %52 = arith.mulf %48, %48 : vector<4x33xf32>
    %53 = arith.mulf %51, %51 : vector<4x33xf32>
    %54 = arith.addf %52, %53 : vector<4x33xf32>
    %cst_42 = arith.constant 0.44721359 : f32
    %55 = vector.broadcast %cst_42 : f32 to vector<4x33xf32>
    %56 = arith.mulf %55, %6 : vector<4x33xf32>
    %cst_43 = arith.constant 0.44721359 : f32
    %57 = vector.broadcast %cst_43 : f32 to vector<4x33xf32>
    %58 = arith.mulf %57, %7 : vector<4x33xf32>
    %cst_44 = arith.constant 0.138196602 : f32
    %59 = vector.broadcast %cst_44 : f32 to vector<4x33xf32>
    %60 = arith.mulf %59, %10 : vector<4x33xf32>
    %61 = arith.addf %56, %60 : vector<4x33xf32>
    %cst_45 = arith.constant 0.138196602 : f32
    %62 = vector.broadcast %cst_45 : f32 to vector<4x33xf32>
    %63 = arith.mulf %62, %11 : vector<4x33xf32>
    %64 = arith.addf %58, %63 : vector<4x33xf32>
    %cst_46 = arith.constant -0.425325394 : f32
    %65 = vector.broadcast %cst_46 : f32 to vector<4x33xf32>
    %66 = arith.mulf %65, %11 : vector<4x33xf32>
    %67 = arith.subf %61, %66 : vector<4x33xf32>
    %cst_47 = arith.constant -0.425325394 : f32
    %68 = vector.broadcast %cst_47 : f32 to vector<4x33xf32>
    %69 = arith.mulf %68, %10 : vector<4x33xf32>
    %70 = arith.addf %64, %69 : vector<4x33xf32>
    %cst_48 = arith.constant -0.361803412 : f32
    %71 = vector.broadcast %cst_48 : f32 to vector<4x33xf32>
    %72 = arith.mulf %71, %14 : vector<4x33xf32>
    %73 = arith.addf %67, %72 : vector<4x33xf32>
    %cst_49 = arith.constant -0.361803412 : f32
    %74 = vector.broadcast %cst_49 : f32 to vector<4x33xf32>
    %75 = arith.mulf %74, %15 : vector<4x33xf32>
    %76 = arith.addf %70, %75 : vector<4x33xf32>
    %cst_50 = arith.constant -0.262865543 : f32
    %77 = vector.broadcast %cst_50 : f32 to vector<4x33xf32>
    %78 = arith.mulf %77, %15 : vector<4x33xf32>
    %79 = arith.subf %73, %78 : vector<4x33xf32>
    %cst_51 = arith.constant -0.262865543 : f32
    %80 = vector.broadcast %cst_51 : f32 to vector<4x33xf32>
    %81 = arith.mulf %80, %14 : vector<4x33xf32>
    %82 = arith.addf %76, %81 : vector<4x33xf32>
    %cst_52 = arith.constant -0.361803412 : f32
    %83 = vector.broadcast %cst_52 : f32 to vector<4x33xf32>
    %84 = arith.mulf %83, %18 : vector<4x33xf32>
    %85 = arith.addf %79, %84 : vector<4x33xf32>
    %cst_53 = arith.constant -0.361803412 : f32
    %86 = vector.broadcast %cst_53 : f32 to vector<4x33xf32>
    %87 = arith.mulf %86, %19 : vector<4x33xf32>
    %88 = arith.addf %82, %87 : vector<4x33xf32>
    %cst_54 = arith.constant 0.262865543 : f32
    %89 = vector.broadcast %cst_54 : f32 to vector<4x33xf32>
    %90 = arith.mulf %89, %19 : vector<4x33xf32>
    %91 = arith.subf %85, %90 : vector<4x33xf32>
    %cst_55 = arith.constant 0.262865543 : f32
    %92 = vector.broadcast %cst_55 : f32 to vector<4x33xf32>
    %93 = arith.mulf %92, %18 : vector<4x33xf32>
    %94 = arith.addf %88, %93 : vector<4x33xf32>
    %cst_56 = arith.constant 0.138196602 : f32
    %95 = vector.broadcast %cst_56 : f32 to vector<4x33xf32>
    %96 = arith.mulf %95, %22 : vector<4x33xf32>
    %97 = arith.addf %91, %96 : vector<4x33xf32>
    %cst_57 = arith.constant 0.138196602 : f32
    %98 = vector.broadcast %cst_57 : f32 to vector<4x33xf32>
    %99 = arith.mulf %98, %23 : vector<4x33xf32>
    %100 = arith.addf %94, %99 : vector<4x33xf32>
    %cst_58 = arith.constant 0.425325394 : f32
    %101 = vector.broadcast %cst_58 : f32 to vector<4x33xf32>
    %102 = arith.mulf %101, %23 : vector<4x33xf32>
    %103 = arith.subf %97, %102 : vector<4x33xf32>
    %cst_59 = arith.constant 0.425325394 : f32
    %104 = vector.broadcast %cst_59 : f32 to vector<4x33xf32>
    %105 = arith.mulf %104, %22 : vector<4x33xf32>
    %106 = arith.addf %100, %105 : vector<4x33xf32>
    %107 = arith.mulf %103, %103 : vector<4x33xf32>
    %108 = arith.mulf %106, %106 : vector<4x33xf32>
    %109 = arith.addf %107, %108 : vector<4x33xf32>
    %cst_60 = arith.constant 0.44721359 : f32
    %110 = vector.broadcast %cst_60 : f32 to vector<4x33xf32>
    %111 = arith.mulf %110, %6 : vector<4x33xf32>
    %cst_61 = arith.constant 0.44721359 : f32
    %112 = vector.broadcast %cst_61 : f32 to vector<4x33xf32>
    %113 = arith.mulf %112, %7 : vector<4x33xf32>
    %cst_62 = arith.constant -0.361803412 : f32
    %114 = vector.broadcast %cst_62 : f32 to vector<4x33xf32>
    %115 = arith.mulf %114, %10 : vector<4x33xf32>
    %116 = arith.addf %111, %115 : vector<4x33xf32>
    %cst_63 = arith.constant -0.361803412 : f32
    %117 = vector.broadcast %cst_63 : f32 to vector<4x33xf32>
    %118 = arith.mulf %117, %11 : vector<4x33xf32>
    %119 = arith.addf %113, %118 : vector<4x33xf32>
    %cst_64 = arith.constant -0.262865543 : f32
    %120 = vector.broadcast %cst_64 : f32 to vector<4x33xf32>
    %121 = arith.mulf %120, %11 : vector<4x33xf32>
    %122 = arith.subf %116, %121 : vector<4x33xf32>
    %cst_65 = arith.constant -0.262865543 : f32
    %123 = vector.broadcast %cst_65 : f32 to vector<4x33xf32>
    %124 = arith.mulf %123, %10 : vector<4x33xf32>
    %125 = arith.addf %119, %124 : vector<4x33xf32>
    %cst_66 = arith.constant 0.138196602 : f32
    %126 = vector.broadcast %cst_66 : f32 to vector<4x33xf32>
    %127 = arith.mulf %126, %14 : vector<4x33xf32>
    %128 = arith.addf %122, %127 : vector<4x33xf32>
    %cst_67 = arith.constant 0.138196602 : f32
    %129 = vector.broadcast %cst_67 : f32 to vector<4x33xf32>
    %130 = arith.mulf %129, %15 : vector<4x33xf32>
    %131 = arith.addf %125, %130 : vector<4x33xf32>
    %cst_68 = arith.constant 0.425325394 : f32
    %132 = vector.broadcast %cst_68 : f32 to vector<4x33xf32>
    %133 = arith.mulf %132, %15 : vector<4x33xf32>
    %134 = arith.subf %128, %133 : vector<4x33xf32>
    %cst_69 = arith.constant 0.425325394 : f32
    %135 = vector.broadcast %cst_69 : f32 to vector<4x33xf32>
    %136 = arith.mulf %135, %14 : vector<4x33xf32>
    %137 = arith.addf %131, %136 : vector<4x33xf32>
    %cst_70 = arith.constant 0.138196602 : f32
    %138 = vector.broadcast %cst_70 : f32 to vector<4x33xf32>
    %139 = arith.mulf %138, %18 : vector<4x33xf32>
    %140 = arith.addf %134, %139 : vector<4x33xf32>
    %cst_71 = arith.constant 0.138196602 : f32
    %141 = vector.broadcast %cst_71 : f32 to vector<4x33xf32>
    %142 = arith.mulf %141, %19 : vector<4x33xf32>
    %143 = arith.addf %137, %142 : vector<4x33xf32>
    %cst_72 = arith.constant -0.425325394 : f32
    %144 = vector.broadcast %cst_72 : f32 to vector<4x33xf32>
    %145 = arith.mulf %144, %19 : vector<4x33xf32>
    %146 = arith.subf %140, %145 : vector<4x33xf32>
    %cst_73 = arith.constant -0.425325394 : f32
    %147 = vector.broadcast %cst_73 : f32 to vector<4x33xf32>
    %148 = arith.mulf %147, %18 : vector<4x33xf32>
    %149 = arith.addf %143, %148 : vector<4x33xf32>
    %cst_74 = arith.constant -0.361803412 : f32
    %150 = vector.broadcast %cst_74 : f32 to vector<4x33xf32>
    %151 = arith.mulf %150, %22 : vector<4x33xf32>
    %152 = arith.addf %146, %151 : vector<4x33xf32>
    %cst_75 = arith.constant -0.361803412 : f32
    %153 = vector.broadcast %cst_75 : f32 to vector<4x33xf32>
    %154 = arith.mulf %153, %23 : vector<4x33xf32>
    %155 = arith.addf %149, %154 : vector<4x33xf32>
    %cst_76 = arith.constant 0.262865543 : f32
    %156 = vector.broadcast %cst_76 : f32 to vector<4x33xf32>
    %157 = arith.mulf %156, %23 : vector<4x33xf32>
    %158 = arith.subf %152, %157 : vector<4x33xf32>
    %cst_77 = arith.constant 0.262865543 : f32
    %159 = vector.broadcast %cst_77 : f32 to vector<4x33xf32>
    %160 = arith.mulf %159, %22 : vector<4x33xf32>
    %161 = arith.addf %155, %160 : vector<4x33xf32>
    %162 = arith.mulf %158, %158 : vector<4x33xf32>
    %163 = arith.mulf %161, %161 : vector<4x33xf32>
    %164 = arith.addf %162, %163 : vector<4x33xf32>
    %cst_78 = arith.constant 0.44721359 : f32
    %165 = vector.broadcast %cst_78 : f32 to vector<4x33xf32>
    %166 = arith.mulf %165, %6 : vector<4x33xf32>
    %cst_79 = arith.constant 0.44721359 : f32
    %167 = vector.broadcast %cst_79 : f32 to vector<4x33xf32>
    %168 = arith.mulf %167, %7 : vector<4x33xf32>
    %cst_80 = arith.constant -0.361803412 : f32
    %169 = vector.broadcast %cst_80 : f32 to vector<4x33xf32>
    %170 = arith.mulf %169, %10 : vector<4x33xf32>
    %171 = arith.addf %166, %170 : vector<4x33xf32>
    %cst_81 = arith.constant -0.361803412 : f32
    %172 = vector.broadcast %cst_81 : f32 to vector<4x33xf32>
    %173 = arith.mulf %172, %11 : vector<4x33xf32>
    %174 = arith.addf %168, %173 : vector<4x33xf32>
    %cst_82 = arith.constant 0.262865543 : f32
    %175 = vector.broadcast %cst_82 : f32 to vector<4x33xf32>
    %176 = arith.mulf %175, %11 : vector<4x33xf32>
    %177 = arith.subf %171, %176 : vector<4x33xf32>
    %cst_83 = arith.constant 0.262865543 : f32
    %178 = vector.broadcast %cst_83 : f32 to vector<4x33xf32>
    %179 = arith.mulf %178, %10 : vector<4x33xf32>
    %180 = arith.addf %174, %179 : vector<4x33xf32>
    %cst_84 = arith.constant 0.138196602 : f32
    %181 = vector.broadcast %cst_84 : f32 to vector<4x33xf32>
    %182 = arith.mulf %181, %14 : vector<4x33xf32>
    %183 = arith.addf %177, %182 : vector<4x33xf32>
    %cst_85 = arith.constant 0.138196602 : f32
    %184 = vector.broadcast %cst_85 : f32 to vector<4x33xf32>
    %185 = arith.mulf %184, %15 : vector<4x33xf32>
    %186 = arith.addf %180, %185 : vector<4x33xf32>
    %cst_86 = arith.constant -0.425325394 : f32
    %187 = vector.broadcast %cst_86 : f32 to vector<4x33xf32>
    %188 = arith.mulf %187, %15 : vector<4x33xf32>
    %189 = arith.subf %183, %188 : vector<4x33xf32>
    %cst_87 = arith.constant -0.425325394 : f32
    %190 = vector.broadcast %cst_87 : f32 to vector<4x33xf32>
    %191 = arith.mulf %190, %14 : vector<4x33xf32>
    %192 = arith.addf %186, %191 : vector<4x33xf32>
    %cst_88 = arith.constant 0.138196602 : f32
    %193 = vector.broadcast %cst_88 : f32 to vector<4x33xf32>
    %194 = arith.mulf %193, %18 : vector<4x33xf32>
    %195 = arith.addf %189, %194 : vector<4x33xf32>
    %cst_89 = arith.constant 0.138196602 : f32
    %196 = vector.broadcast %cst_89 : f32 to vector<4x33xf32>
    %197 = arith.mulf %196, %19 : vector<4x33xf32>
    %198 = arith.addf %192, %197 : vector<4x33xf32>
    %cst_90 = arith.constant 0.425325394 : f32
    %199 = vector.broadcast %cst_90 : f32 to vector<4x33xf32>
    %200 = arith.mulf %199, %19 : vector<4x33xf32>
    %201 = arith.subf %195, %200 : vector<4x33xf32>
    %cst_91 = arith.constant 0.425325394 : f32
    %202 = vector.broadcast %cst_91 : f32 to vector<4x33xf32>
    %203 = arith.mulf %202, %18 : vector<4x33xf32>
    %204 = arith.addf %198, %203 : vector<4x33xf32>
    %cst_92 = arith.constant -0.361803412 : f32
    %205 = vector.broadcast %cst_92 : f32 to vector<4x33xf32>
    %206 = arith.mulf %205, %22 : vector<4x33xf32>
    %207 = arith.addf %201, %206 : vector<4x33xf32>
    %cst_93 = arith.constant -0.361803412 : f32
    %208 = vector.broadcast %cst_93 : f32 to vector<4x33xf32>
    %209 = arith.mulf %208, %23 : vector<4x33xf32>
    %210 = arith.addf %204, %209 : vector<4x33xf32>
    %cst_94 = arith.constant -0.262865543 : f32
    %211 = vector.broadcast %cst_94 : f32 to vector<4x33xf32>
    %212 = arith.mulf %211, %23 : vector<4x33xf32>
    %213 = arith.subf %207, %212 : vector<4x33xf32>
    %cst_95 = arith.constant -0.262865543 : f32
    %214 = vector.broadcast %cst_95 : f32 to vector<4x33xf32>
    %215 = arith.mulf %214, %22 : vector<4x33xf32>
    %216 = arith.addf %210, %215 : vector<4x33xf32>
    %217 = arith.mulf %213, %213 : vector<4x33xf32>
    %218 = arith.mulf %216, %216 : vector<4x33xf32>
    %219 = arith.addf %217, %218 : vector<4x33xf32>
    %cst_96 = arith.constant 0.44721359 : f32
    %220 = vector.broadcast %cst_96 : f32 to vector<4x33xf32>
    %221 = arith.mulf %220, %6 : vector<4x33xf32>
    %cst_97 = arith.constant 0.44721359 : f32
    %222 = vector.broadcast %cst_97 : f32 to vector<4x33xf32>
    %223 = arith.mulf %222, %7 : vector<4x33xf32>
    %cst_98 = arith.constant 0.138196602 : f32
    %224 = vector.broadcast %cst_98 : f32 to vector<4x33xf32>
    %225 = arith.mulf %224, %10 : vector<4x33xf32>
    %226 = arith.addf %221, %225 : vector<4x33xf32>
    %cst_99 = arith.constant 0.138196602 : f32
    %227 = vector.broadcast %cst_99 : f32 to vector<4x33xf32>
    %228 = arith.mulf %227, %11 : vector<4x33xf32>
    %229 = arith.addf %223, %228 : vector<4x33xf32>
    %cst_100 = arith.constant 0.425325394 : f32
    %230 = vector.broadcast %cst_100 : f32 to vector<4x33xf32>
    %231 = arith.mulf %230, %11 : vector<4x33xf32>
    %232 = arith.subf %226, %231 : vector<4x33xf32>
    %cst_101 = arith.constant 0.425325394 : f32
    %233 = vector.broadcast %cst_101 : f32 to vector<4x33xf32>
    %234 = arith.mulf %233, %10 : vector<4x33xf32>
    %235 = arith.addf %229, %234 : vector<4x33xf32>
    %cst_102 = arith.constant -0.361803412 : f32
    %236 = vector.broadcast %cst_102 : f32 to vector<4x33xf32>
    %237 = arith.mulf %236, %14 : vector<4x33xf32>
    %238 = arith.addf %232, %237 : vector<4x33xf32>
    %cst_103 = arith.constant -0.361803412 : f32
    %239 = vector.broadcast %cst_103 : f32 to vector<4x33xf32>
    %240 = arith.mulf %239, %15 : vector<4x33xf32>
    %241 = arith.addf %235, %240 : vector<4x33xf32>
    %cst_104 = arith.constant 0.262865543 : f32
    %242 = vector.broadcast %cst_104 : f32 to vector<4x33xf32>
    %243 = arith.mulf %242, %15 : vector<4x33xf32>
    %244 = arith.subf %238, %243 : vector<4x33xf32>
    %cst_105 = arith.constant 0.262865543 : f32
    %245 = vector.broadcast %cst_105 : f32 to vector<4x33xf32>
    %246 = arith.mulf %245, %14 : vector<4x33xf32>
    %247 = arith.addf %241, %246 : vector<4x33xf32>
    %cst_106 = arith.constant -0.361803412 : f32
    %248 = vector.broadcast %cst_106 : f32 to vector<4x33xf32>
    %249 = arith.mulf %248, %18 : vector<4x33xf32>
    %250 = arith.addf %244, %249 : vector<4x33xf32>
    %cst_107 = arith.constant -0.361803412 : f32
    %251 = vector.broadcast %cst_107 : f32 to vector<4x33xf32>
    %252 = arith.mulf %251, %19 : vector<4x33xf32>
    %253 = arith.addf %247, %252 : vector<4x33xf32>
    %cst_108 = arith.constant -0.262865543 : f32
    %254 = vector.broadcast %cst_108 : f32 to vector<4x33xf32>
    %255 = arith.mulf %254, %19 : vector<4x33xf32>
    %256 = arith.subf %250, %255 : vector<4x33xf32>
    %cst_109 = arith.constant -0.262865543 : f32
    %257 = vector.broadcast %cst_109 : f32 to vector<4x33xf32>
    %258 = arith.mulf %257, %18 : vector<4x33xf32>
    %259 = arith.addf %253, %258 : vector<4x33xf32>
    %cst_110 = arith.constant 0.138196602 : f32
    %260 = vector.broadcast %cst_110 : f32 to vector<4x33xf32>
    %261 = arith.mulf %260, %22 : vector<4x33xf32>
    %262 = arith.addf %256, %261 : vector<4x33xf32>
    %cst_111 = arith.constant 0.138196602 : f32
    %263 = vector.broadcast %cst_111 : f32 to vector<4x33xf32>
    %264 = arith.mulf %263, %23 : vector<4x33xf32>
    %265 = arith.addf %259, %264 : vector<4x33xf32>
    %cst_112 = arith.constant -0.425325394 : f32
    %266 = vector.broadcast %cst_112 : f32 to vector<4x33xf32>
    %267 = arith.mulf %266, %23 : vector<4x33xf32>
    %268 = arith.subf %262, %267 : vector<4x33xf32>
    %cst_113 = arith.constant -0.425325394 : f32
    %269 = vector.broadcast %cst_113 : f32 to vector<4x33xf32>
    %270 = arith.mulf %269, %22 : vector<4x33xf32>
    %271 = arith.addf %265, %270 : vector<4x33xf32>
    %272 = arith.mulf %268, %268 : vector<4x33xf32>
    %273 = arith.mulf %271, %271 : vector<4x33xf32>
    %274 = arith.addf %272, %273 : vector<4x33xf32>
    %cst_114 = arith.constant 0.44721359 : f32
    %275 = vector.broadcast %cst_114 : f32 to vector<4x33xf32>
    %276 = arith.mulf %275, %54 : vector<4x33xf32>
    %cst_115 = arith.constant 0.44721359 : f32
    %277 = vector.broadcast %cst_115 : f32 to vector<4x33xf32>
    %278 = arith.mulf %277, %109 : vector<4x33xf32>
    %279 = arith.addf %276, %278 : vector<4x33xf32>
    %cst_116 = arith.constant 0.44721359 : f32
    %280 = vector.broadcast %cst_116 : f32 to vector<4x33xf32>
    %281 = arith.mulf %280, %164 : vector<4x33xf32>
    %282 = arith.addf %279, %281 : vector<4x33xf32>
    %cst_117 = arith.constant 0.44721359 : f32
    %283 = vector.broadcast %cst_117 : f32 to vector<4x33xf32>
    %284 = arith.mulf %283, %219 : vector<4x33xf32>
    %285 = arith.addf %282, %284 : vector<4x33xf32>
    %cst_118 = arith.constant 0.44721359 : f32
    %286 = vector.broadcast %cst_118 : f32 to vector<4x33xf32>
    %287 = arith.mulf %286, %274 : vector<4x33xf32>
    %288 = arith.addf %285, %287 : vector<4x33xf32>
    %cst_119 = arith.constant dense<0.000000e+00> : vector<4x66xf32>
    %289 = tpu.matmul %288, %2, %cst_119 {dimension_numbers = #tpu.dot_dimension_numbers<[1], [0], [0], [1], [0, 0, 1, 1], [], []>} : vector<4x33xf32>, vector<33x66xf32>, vector<4x66xf32> -> vector<4x66xf32>
    %c0_120 = arith.constant 0 : index
    %c0_121 = arith.constant 0 : index
    %c0_122 = arith.constant 0 : index
    %c0_123 = arith.constant 0 : index
    %290 = vector.load %arg7[%c0_120, %c0_121, %c0_122, %c0_123] : memref<1x5x4x66xf32, #tpu.memory_space<vmem>>, vector<1x1x4x66xf32>
    %291 = vector.shape_cast %290 : vector<1x1x4x66xf32> to vector<4x66xf32>
    %292 = vector.shape_cast %289 : vector<4x66xf32> to vector<1x1x4x66xf32>
    tpu.vector_store %arg7[%c0_120, %c0_121, %c0_122, %c0_123], %292 {strides = array<i32>} : memref<1x5x4x66xf32, #tpu.memory_space<vmem>>, vector<1x1x4x66xf32>,
    %cst_124 = arith.constant 0.44721359 : f32
    %293 = vector.broadcast %cst_124 : f32 to vector<4x33xf32>
    %294 = arith.mulf %293, %54 : vector<4x33xf32>
    %cst_125 = arith.constant 0.138196602 : f32
    %295 = vector.broadcast %cst_125 : f32 to vector<4x33xf32>
    %296 = arith.mulf %295, %109 : vector<4x33xf32>
    %297 = arith.addf %294, %296 : vector<4x33xf32>
    %cst_126 = arith.constant 0.425325394 : f32
    %298 = vector.broadcast %cst_126 : f32 to vector<4x33xf32>
    %299 = arith.mulf %298, %109 : vector<4x33xf32>
    %cst_127 = arith.constant -0.361803412 : f32
    %300 = vector.broadcast %cst_127 : f32 to vector<4x33xf32>
    %301 = arith.mulf %300, %164 : vector<4x33xf32>
    %302 = arith.addf %297, %301 : vector<4x33xf32>
    %cst_128 = arith.constant -0.262865543 : f32
    %303 = vector.broadcast %cst_128 : f32 to vector<4x33xf32>
    %304 = arith.mulf %303, %164 : vector<4x33xf32>
    %305 = arith.subf %299, %304 : vector<4x33xf32>
    %cst_129 = arith.constant -0.361803412 : f32
    %306 = vector.broadcast %cst_129 : f32 to vector<4x33xf32>
    %307 = arith.mulf %306, %219 : vector<4x33xf32>
    %308 = arith.addf %302, %307 : vector<4x33xf32>
    %cst_130 = arith.constant 0.262865543 : f32
    %309 = vector.broadcast %cst_130 : f32 to vector<4x33xf32>
    %310 = arith.mulf %309, %219 : vector<4x33xf32>
    %311 = arith.subf %305, %310 : vector<4x33xf32>
    %cst_131 = arith.constant 0.138196602 : f32
    %312 = vector.broadcast %cst_131 : f32 to vector<4x33xf32>
    %313 = arith.mulf %312, %274 : vector<4x33xf32>
    %314 = arith.addf %308, %313 : vector<4x33xf32>
    %cst_132 = arith.constant 0.425325394 : f32
    %315 = vector.broadcast %cst_132 : f32 to vector<4x33xf32>
    %316 = arith.mulf %315, %274 : vector<4x33xf32>
    %317 = arith.subf %311, %316 : vector<4x33xf32>
    %cst_133 = arith.constant dense<0.000000e+00> : vector<4x66xf32>
    %318 = tpu.matmul %314, %2, %cst_133 {dimension_numbers = #tpu.dot_dimension_numbers<[1], [0], [0], [1], [0, 0, 1, 1], [], []>} : vector<4x33xf32>, vector<33x66xf32>, vector<4x66xf32> -> vector<4x66xf32>
    %cst_134 = arith.constant dense<0.000000e+00> : vector<4x66xf32>
    %319 = tpu.matmul %317, %3, %cst_134 {dimension_numbers = #tpu.dot_dimension_numbers<[1], [0], [0], [1], [0, 0, 1, 1], [], []>} : vector<4x33xf32>, vector<33x66xf32>, vector<4x66xf32> -> vector<4x66xf32>
    %320 = arith.addf %318, %319 : vector<4x66xf32>
    %c0_135 = arith.constant 0 : index
    %c1_136 = arith.constant 1 : index
    %c0_137 = arith.constant 0 : index
    %c0_138 = arith.constant 0 : index
    %321 = vector.load %arg7[%c0_135, %c1_136, %c0_137, %c0_138] : memref<1x5x4x66xf32, #tpu.memory_space<vmem>>, vector<1x1x4x66xf32>
    %322 = vector.shape_cast %321 : vector<1x1x4x66xf32> to vector<4x66xf32>
    %323 = vector.shape_cast %320 : vector<4x66xf32> to vector<1x1x4x66xf32>
    tpu.vector_store %arg7[%c0_135, %c1_136, %c0_137, %c0_138], %323 {strides = array<i32>} : memref<1x5x4x66xf32, #tpu.memory_space<vmem>>, vector<1x1x4x66xf32>,
    %cst_139 = arith.constant 0.44721359 : f32
    %324 = vector.broadcast %cst_139 : f32 to vector<4x33xf32>
    %325 = arith.mulf %324, %54 : vector<4x33xf32>
    %cst_140 = arith.constant -0.361803412 : f32
    %326 = vector.broadcast %cst_140 : f32 to vector<4x33xf32>
    %327 = arith.mulf %326, %109 : vector<4x33xf32>
    %328 = arith.addf %325, %327 : vector<4x33xf32>
    %cst_141 = arith.constant 0.262865543 : f32
    %329 = vector.broadcast %cst_141 : f32 to vector<4x33xf32>
    %330 = arith.mulf %329, %109 : vector<4x33xf32>
    %cst_142 = arith.constant 0.138196602 : f32
    %331 = vector.broadcast %cst_142 : f32 to vector<4x33xf32>
    %332 = arith.mulf %331, %164 : vector<4x33xf32>
    %333 = arith.addf %328, %332 : vector<4x33xf32>
    %cst_143 = arith.constant 0.425325394 : f32
    %334 = vector.broadcast %cst_143 : f32 to vector<4x33xf32>
    %335 = arith.mulf %334, %164 : vector<4x33xf32>
    %336 = arith.subf %330, %335 : vector<4x33xf32>
    %cst_144 = arith.constant 0.138196602 : f32
    %337 = vector.broadcast %cst_144 : f32 to vector<4x33xf32>
    %338 = arith.mulf %337, %219 : vector<4x33xf32>
    %339 = arith.addf %333, %338 : vector<4x33xf32>
    %cst_145 = arith.constant -0.425325394 : f32
    %340 = vector.broadcast %cst_145 : f32 to vector<4x33xf32>
    %341 = arith.mulf %340, %219 : vector<4x33xf32>
    %342 = arith.subf %336, %341 : vector<4x33xf32>
    %cst_146 = arith.constant -0.361803412 : f32
    %343 = vector.broadcast %cst_146 : f32 to vector<4x33xf32>
    %344 = arith.mulf %343, %274 : vector<4x33xf32>
    %345 = arith.addf %339, %344 : vector<4x33xf32>
    %cst_147 = arith.constant 0.262865543 : f32
    %346 = vector.broadcast %cst_147 : f32 to vector<4x33xf32>
    %347 = arith.mulf %346, %274 : vector<4x33xf32>
    %348 = arith.subf %342, %347 : vector<4x33xf32>
    %cst_148 = arith.constant dense<0.000000e+00> : vector<4x66xf32>
    %349 = tpu.matmul %345, %2, %cst_148 {dimension_numbers = #tpu.dot_dimension_numbers<[1], [0], [0], [1], [0, 0, 1, 1], [], []>} : vector<4x33xf32>, vector<33x66xf32>, vector<4x66xf32> -> vector<4x66xf32>
    %cst_149 = arith.constant dense<0.000000e+00> : vector<4x66xf32>
    %350 = tpu.matmul %348, %3, %cst_149 {dimension_numbers = #tpu.dot_dimension_numbers<[1], [0], [0], [1], [0, 0, 1, 1], [], []>} : vector<4x33xf32>, vector<33x66xf32>, vector<4x66xf32> -> vector<4x66xf32>
    %351 = arith.addf %349, %350 : vector<4x66xf32>
    %c0_150 = arith.constant 0 : index
    %c2_151 = arith.constant 2 : index
    %c0_152 = arith.constant 0 : index
    %c0_153 = arith.constant 0 : index
    %352 = vector.load %arg7[%c0_150, %c2_151, %c0_152, %c0_153] : memref<1x5x4x66xf32, #tpu.memory_space<vmem>>, vector<1x1x4x66xf32>
    %353 = vector.shape_cast %352 : vector<1x1x4x66xf32> to vector<4x66xf32>
    %354 = vector.shape_cast %351 : vector<4x66xf32> to vector<1x1x4x66xf32>
    tpu.vector_store %arg7[%c0_150, %c2_151, %c0_152, %c0_153], %354 {strides = array<i32>} : memref<1x5x4x66xf32, #tpu.memory_space<vmem>>, vector<1x1x4x66xf32>,
    %cst_154 = arith.constant 0.44721359 : f32
    %355 = vector.broadcast %cst_154 : f32 to vector<4x33xf32>
    %356 = arith.mulf %355, %54 : vector<4x33xf32>
    %cst_155 = arith.constant -0.361803412 : f32
    %357 = vector.broadcast %cst_155 : f32 to vector<4x33xf32>
    %358 = arith.mulf %357, %109 : vector<4x33xf32>
    %359 = arith.addf %356, %358 : vector<4x33xf32>
    %cst_156 = arith.constant -0.262865543 : f32
    %360 = vector.broadcast %cst_156 : f32 to vector<4x33xf32>
    %361 = arith.mulf %360, %109 : vector<4x33xf32>
    %cst_157 = arith.constant 0.138196602 : f32
    %362 = vector.broadcast %cst_157 : f32 to vector<4x33xf32>
    %363 = arith.mulf %362, %164 : vector<4x33xf32>
    %364 = arith.addf %359, %363 : vector<4x33xf32>
    %cst_158 = arith.constant -0.425325394 : f32
    %365 = vector.broadcast %cst_158 : f32 to vector<4x33xf32>
    %366 = arith.mulf %365, %164 : vector<4x33xf32>
    %367 = arith.subf %361, %366 : vector<4x33xf32>
    %cst_159 = arith.constant 0.138196602 : f32
    %368 = vector.broadcast %cst_159 : f32 to vector<4x33xf32>
    %369 = arith.mulf %368, %219 : vector<4x33xf32>
    %370 = arith.addf %364, %369 : vector<4x33xf32>
    %cst_160 = arith.constant 0.425325394 : f32
    %371 = vector.broadcast %cst_160 : f32 to vector<4x33xf32>
    %372 = arith.mulf %371, %219 : vector<4x33xf32>
    %373 = arith.subf %367, %372 : vector<4x33xf32>
    %cst_161 = arith.constant -0.361803412 : f32
    %374 = vector.broadcast %cst_161 : f32 to vector<4x33xf32>
    %375 = arith.mulf %374, %274 : vector<4x33xf32>
    %376 = arith.addf %370, %375 : vector<4x33xf32>
    %cst_162 = arith.constant -0.262865543 : f32
    %377 = vector.broadcast %cst_162 : f32 to vector<4x33xf32>
    %378 = arith.mulf %377, %274 : vector<4x33xf32>
    %379 = arith.subf %373, %378 : vector<4x33xf32>
    %cst_163 = arith.constant dense<0.000000e+00> : vector<4x66xf32>
    %380 = tpu.matmul %376, %2, %cst_163 {dimension_numbers = #tpu.dot_dimension_numbers<[1], [0], [0], [1], [0, 0, 1, 1], [], []>} : vector<4x33xf32>, vector<33x66xf32>, vector<4x66xf32> -> vector<4x66xf32>
    %cst_164 = arith.constant dense<0.000000e+00> : vector<4x66xf32>
    %381 = tpu.matmul %379, %3, %cst_164 {dimension_numbers = #tpu.dot_dimension_numbers<[1], [0], [0], [1], [0, 0, 1, 1], [], []>} : vector<4x33xf32>, vector<33x66xf32>, vector<4x66xf32> -> vector<4x66xf32>
    %382 = arith.addf %380, %381 : vector<4x66xf32>
    %c0_165 = arith.constant 0 : index
    %c3_166 = arith.constant 3 : index
    %c0_167 = arith.constant 0 : index
    %c0_168 = arith.constant 0 : index
    %383 = vector.load %arg7[%c0_165, %c3_166, %c0_167, %c0_168] : memref<1x5x4x66xf32, #tpu.memory_space<vmem>>, vector<1x1x4x66xf32>
    %384 = vector.shape_cast %383 : vector<1x1x4x66xf32> to vector<4x66xf32>
    %385 = vector.shape_cast %382 : vector<4x66xf32> to vector<1x1x4x66xf32>
    tpu.vector_store %arg7[%c0_165, %c3_166, %c0_167, %c0_168], %385 {strides = array<i32>} : memref<1x5x4x66xf32, #tpu.memory_space<vmem>>, vector<1x1x4x66xf32>,
    %cst_169 = arith.constant 0.44721359 : f32
    %386 = vector.broadcast %cst_169 : f32 to vector<4x33xf32>
    %387 = arith.mulf %386, %54 : vector<4x33xf32>
    %cst_170 = arith.constant 0.138196602 : f32
    %388 = vector.broadcast %cst_170 : f32 to vector<4x33xf32>
    %389 = arith.mulf %388, %109 : vector<4x33xf32>
    %390 = arith.addf %387, %389 : vector<4x33xf32>
    %cst_171 = arith.constant -0.425325394 : f32
    %391 = vector.broadcast %cst_171 : f32 to vector<4x33xf32>
    %392 = arith.mulf %391, %109 : vector<4x33xf32>
    %cst_172 = arith.constant -0.361803412 : f32
    %393 = vector.broadcast %cst_172 : f32 to vector<4x33xf32>
    %394 = arith.mulf %393, %164 : vector<4x33xf32>
    %395 = arith.addf %390, %394 : vector<4x33xf32>
    %cst_173 = arith.constant 0.262865543 : f32
    %396 = vector.broadcast %cst_173 : f32 to vector<4x33xf32>
    %397 = arith.mulf %396, %164 : vector<4x33xf32>
    %398 = arith.subf %392, %397 : vector<4x33xf32>
    %cst_174 = arith.constant -0.361803412 : f32
    %399 = vector.broadcast %cst_174 : f32 to vector<4x33xf32>
    %400 = arith.mulf %399, %219 : vector<4x33xf32>
    %401 = arith.addf %395, %400 : vector<4x33xf32>
    %cst_175 = arith.constant -0.262865543 : f32
    %402 = vector.broadcast %cst_175 : f32 to vector<4x33xf32>
    %403 = arith.mulf %402, %219 : vector<4x33xf32>
    %404 = arith.subf %398, %403 : vector<4x33xf32>
    %cst_176 = arith.constant 0.138196602 : f32
    %405 = vector.broadcast %cst_176 : f32 to vector<4x33xf32>
    %406 = arith.mulf %405, %274 : vector<4x33xf32>
    %407 = arith.addf %401, %406 : vector<4x33xf32>
    %cst_177 = arith.constant -0.425325394 : f32
    %408 = vector.broadcast %cst_177 : f32 to vector<4x33xf32>
    %409 = arith.mulf %408, %274 : vector<4x33xf32>
    %410 = arith.subf %404, %409 : vector<4x33xf32>
    %cst_178 = arith.constant dense<0.000000e+00> : vector<4x66xf32>
    %411 = tpu.matmul %407, %2, %cst_178 {dimension_numbers = #tpu.dot_dimension_numbers<[1], [0], [0], [1], [0, 0, 1, 1], [], []>} : vector<4x33xf32>, vector<33x66xf32>, vector<4x66xf32> -> vector<4x66xf32>
    %cst_179 = arith.constant dense<0.000000e+00> : vector<4x66xf32>
    %412 = tpu.matmul %410, %3, %cst_179 {dimension_numbers = #tpu.dot_dimension_numbers<[1], [0], [0], [1], [0, 0, 1, 1], [], []>} : vector<4x33xf32>, vector<33x66xf32>, vector<4x66xf32> -> vector<4x66xf32>
    %413 = arith.addf %411, %412 : vector<4x66xf32>
    %c0_180 = arith.constant 0 : index
    %c4_181 = arith.constant 4 : index
    %c0_182 = arith.constant 0 : index
    %c0_183 = arith.constant 0 : index
    %414 = vector.load %arg7[%c0_180, %c4_181, %c0_182, %c0_183] : memref<1x5x4x66xf32, #tpu.memory_space<vmem>>, vector<1x1x4x66xf32>
    %415 = vector.shape_cast %414 : vector<1x1x4x66xf32> to vector<4x66xf32>
    %416 = vector.shape_cast %413 : vector<4x66xf32> to vector<1x1x4x66xf32>
    tpu.vector_store %arg7[%c0_180, %c4_181, %c0_182, %c0_183], %416 {strides = array<i32>} : memref<1x5x4x66xf32, #tpu.memory_space<vmem>>, vector<1x1x4x66xf32>,
    return
  }
  func.func @transform_0(%arg0: i32, %arg1: i32) -> (i32, i32, i32, i32) {
    %c0_i32 = arith.constant 0 : i32
    %c0_i32_0 = arith.constant 0 : i32
    %c0_i32_1 = arith.constant 0 : i32
    return %arg0, %c0_i32, %arg1, %c0_i32_0 : i32, i32, i32, i32
  }
  func.func @transform_1(%arg0: i32, %arg1: i32) -> (i32, i32) {
    %c0_i32 = arith.constant 0 : i32
    %c0_i32_0 = arith.constant 0 : i32
    %c0_i32_1 = arith.constant 0 : i32
    return %c0_i32, %c0_i32_0 : i32, i32
  }
  func.func @transform_2(%arg0: i32, %arg1: i32) -> (i32, i32) {
    %c0_i32 = arith.constant 0 : i32
    %c0_i32_0 = arith.constant 0 : i32
    %c0_i32_1 = arith.constant 0 : i32
    return %c0_i32, %c0_i32_0 : i32, i32
  }
  func.func @transform_3(%arg0: i32, %arg1: i32) -> (i32, i32) {
    %c0_i32 = arith.constant 0 : i32
    %c0_i32_0 = arith.constant 0 : i32
    %c0_i32_1 = arith.constant 0 : i32
    return %c0_i32, %c0_i32_0 : i32, i32
  }
  func.func @transform_4(%arg0: i32, %arg1: i32) -> (i32, i32) {
    %c0_i32 = arith.constant 0 : i32
    %c0_i32_0 = arith.constant 0 : i32
    %c0_i32_1 = arith.constant 0 : i32
    return %c0_i32, %c0_i32_0 : i32, i32
  }
  func.func @transform_5(%arg0: i32, %arg1: i32) -> (i32, i32, i32, i32) {
    %c0_i32 = arith.constant 0 : i32
    %c0_i32_0 = arith.constant 0 : i32
    %c0_i32_1 = arith.constant 0 : i32
    return %arg0, %c0_i32, %arg1, %c0_i32_0 : i32, i32, i32, i32
  }
}

</mosaic_0001>

<llo_original>
// kernel: tpu_custom_call.1
$region0: #{tpu_custom_call.1}
  #allocation0 [shape = 'u32[]', space=smem, size = 0x4, offset = 0x4, fixed_abs, tag = 'smem constant byte address 0x4 - core index']
  #allocation1 [shape = 'u32[144,128]{1,0:T(1,128)}', space=vmem, size = 0x12000, scoped, tag = 'internal scratch']
  %s0 = inlined_call_operand.hbm [shape: f32[2,5,4,33], index: 0, kind: input, shape index: {}]
  %s1 = inlined_call_operand.hbm [shape: f32[33,33], index: 1, kind: input, shape index: {}]
  %s2 = inlined_call_operand.hbm [shape: f32[33,33], index: 2, kind: input, shape index: {}]
  %s3 = inlined_call_operand.hbm [shape: f32[33,66], index: 3, kind: input, shape index: {}]
  %s4 = inlined_call_operand.hbm [shape: f32[33,66], index: 4, kind: input, shape index: {}]
  %s5 = inlined_call_operand.hbm [shape: f32[2,5,4,66], index: 5, kind: output, shape index: {}]
  %s6 = sld [smem:[#allocation0]]
  $region73: #{tpu_custom_call.1} parent=0
    _
  %s8 = ssub.s32 1, %s6
  %s9 = scalar_select 0, %s8, %s6
  $region1: #{tpu_custom_call.1} parent=0
    #allocation2 [shape = 'u8[20480]{0}', space=vmem, size = 0x5000, scoped, tag = 'input window, operand 0']
    #allocation3 [shape = 's32[2]{0}', space=sflag, size = 0x8, scoped, tag = 'scoped memory for tpu_custom_call.1']
    #allocation4 [shape = 's32[2]{0}', space=sflag, size = 0x8, scoped, tag = 'scoped memory for tpu_custom_call.1']
    #allocation5 [shape = 'u8[20480]{0}', space=vmem, size = 0x5000, scoped, tag = 'input window, operand 1, single buffered']
    #allocation6 [shape = 's32[1]{0}', space=sflag, size = 0x4, scoped, tag = 'scoped memory for tpu_custom_call.1']
    #allocation7 [shape = 'u8[20480]{0}', space=vmem, size = 0x5000, scoped, tag = 'input window, operand 2, single buffered']
    #allocation8 [shape = 'u8[20480]{0}', space=vmem, size = 0x5000, scoped, tag = 'input window, operand 3, single buffered']
    #allocation9 [shape = 's32[1]{0}', space=sflag, size = 0x4, scoped, tag = 'scoped memory for tpu_custom_call.1']
    #allocation10 [shape = 'u8[20480]{0}', space=vmem, size = 0x5000, scoped, tag = 'input window, operand 4, single buffered']
    #allocation11 [shape = 'u8[20480]{0}', space=vmem, size = 0x5000, scoped, tag = 'output window, operand 0']
    %10 = vsyncpa [#allocation3], 0
    %s11 = scalar_lea.sflag [#allocation3], 1
    %12 = vsyncpa %s11, 0
    %13 = vsyncpa [#allocation6], 0
    %14 = vsyncpa [#allocation9], 0
    %15 = vsyncpa [#allocation4], 0
    %s16 = scalar_lea.sflag [#allocation4], 1
    %17 = vsyncpa %s16, 0
    loop: start=0, step=1, limit=4
    $region2: #{tpu_custom_call.1} parent=1 // loop_pre_header
      _
    $region3: #{tpu_custom_call.1} parent=1 // loop_header
      %s19 = sphi 0, %s23
      %p20 = scmp.ge.s32.totalorder %s19, 4
      %s26 = sphi 0, %s38
      %s27 = sphi 0, %s34
      %s28 = sphi 0, %s26
      %s29 = sphi 0, %s27
      %s30 = sphi 0, %s28
      %s31 = sphi 0, %s29
      %s43 = sphi 0, %s45
      %s46 = sphi 0, %s43
      %s47 = sphi 0, %s46
      %s63 = sphi 0, %s47
      %s67 = sphi 0, %s67
      %s69 = sphi 0, %s67
      %s70 = sphi 0, %s69
      %s84 = sphi 0, %s70
      %s88 = sphi 0, %s88
      %s90 = sphi 0, %s88
      %s91 = sphi 0, %s90
      %s105 = sphi 0, %s91
      %s109 = sphi 0, %s109
      %s111 = sphi 0, %s109
      %s112 = sphi 0, %s111
      %s126 = sphi 0, %s112
      %s130 = sphi 0, %s130
      %s132 = sphi 0, %s130
      %s133 = sphi 0, %s132
      %s147 = sphi 0, %s133
      %s155 = sphi 0, %s157
      %s158 = sphi 0, %s155
      %s159 = sphi 0, %s158
      %s175 = sphi 0, %s159
    $region4: #{tpu_custom_call.1} parent=1 // loop_header_branch
      %22 = sbr.rel (%p20) target = $region8
    $region5: #{tpu_custom_call.1} parent=1 // loop_body
      %s24 = ssub.s32 %s19, 1
      %s25 = ssub.s32 %s19, 2
      %s32 = sadd.s32 1, %s27
      %p33 = scmp.ge.s32.totalorder %s32, 1
      %s34 = scalar_select %p33, 0, %s32
      %s35 = sadd.s32 1, %s26
      %s36 = scalar_select %p33, %s35, %s26
      %p37 = scmp.ge.s32.totalorder %s36, 2
      %s38 = scalar_select %p37, 0, %s36
      %s39 = ssub.s32 %s26, %s38
      %s40 = ssub.s32 %s27, %s34
      %s41 = sor.u32 %s39, %s40
      %p42 = scmp.eq.s32.totalorder %s41, 0
      %s44 = sadd.s32 %s43, 1
      %s45 = scalar_select %p42, %s43, %s44
      %p48 = pneg %p42
      %p49 = scmp.eq.s32.totalorder %s19, 1
      %p50 = por %p48, %p49
      %p51 = scmp.ne.s32.totalorder %s43, %s46
      %p52 = scmp.eq.s32.totalorder %s19, 0
      %p53 = por %p51, %p52
      %p54 = scmp.ne.s32.totalorder %s43, %s46
      %p55 = scmp.eq.s32.totalorder %s24, 1
      %p56 = por %p54, %p55
      %p57 = scmp.ne.s32.totalorder %s46, %s47
      %p58 = scmp.eq.s32.totalorder %s24, 0
      %p59 = por %p57, %p58
      %p60 = scmp.ne.s32.totalorder %s46, %s47
      %p61 = scmp.eq.s32.totalorder %s25, 1
      %p62 = por %p60, %p61
      %p64 = scmp.ne.s32.totalorder %s47, %s63
      %p65 = scmp.eq.s32.totalorder %s25, 0
      %p66 = por %p64, %p65
      %s68 = sadd.s32 %s67, 1
      %p71 = scmp.eq.s32.totalorder %s19, 1
      %p72 = scmp.ne.s32.totalorder %s67, %s69
      %p73 = scmp.eq.s32.totalorder %s19, 0
      %p74 = por %p72, %p73
      %p75 = scmp.ne.s32.totalorder %s67, %s69
      %p76 = scmp.eq.s32.totalorder %s24, 1
      %p77 = por %p75, %p76
      %p78 = scmp.ne.s32.totalorder %s69, %s70
      %p79 = scmp.eq.s32.totalorder %s24, 0
      %p80 = por %p78, %p79
      %p81 = scmp.ne.s32.totalorder %s69, %s70
      %p82 = scmp.eq.s32.totalorder %s25, 1
      %p83 = por %p81, %p82
      %p85 = scmp.ne.s32.totalorder %s70, %s84
      %p86 = scmp.eq.s32.totalorder %s25, 0
      %p87 = por %p85, %p86
      %s89 = sadd.s32 %s88, 1
      %p92 = scmp.eq.s32.totalorder %s19, 1
      %p93 = scmp.ne.s32.totalorder %s88, %s90
      %p94 = scmp.eq.s32.totalorder %s19, 0
      %p95 = por %p93, %p94
      %p96 = scmp.ne.s32.totalorder %s88, %s90
      %p97 = scmp.eq.s32.totalorder %s24, 1
      %p98 = por %p96, %p97
      %p99 = scmp.ne.s32.totalorder %s90, %s91
      %p100 = scmp.eq.s32.totalorder %s24, 0
      %p101 = por %p99, %p100
      %p102 = scmp.ne.s32.totalorder %s90, %s91
      %p103 = scmp.eq.s32.totalorder %s25, 1
      %p104 = por %p102, %p103
      %p106 = scmp.ne.s32.totalorder %s91, %s105
      %p107 = scmp.eq.s32.totalorder %s25, 0
      %p108 = por %p106, %p107
      %s110 = sadd.s32 %s109, 1
      %p113 = scmp.eq.s32.totalorder %s19, 1
      %p114 = scmp.ne.s32.totalorder %s109, %s111
      %p115 = scmp.eq.s32.totalorder %s19, 0
      %p116 = por %p114, %p115
      %p117 = scmp.ne.s32.totalorder %s109, %s111
      %p118 = scmp.eq.s32.totalorder %s24, 1
      %p119 = por %p117, %p118
      %p120 = scmp.ne.s32.totalorder %s111, %s112
      %p121 = scmp.eq.s32.totalorder %s24, 0
      %p122 = por %p120, %p121
      %p123 = scmp.ne.s32.totalorder %s111, %s112
      %p124 = scmp.eq.s32.totalorder %s25, 1
      %p125 = por %p123, %p124
      %p127 = scmp.ne.s32.totalorder %s112, %s126
      %p128 = scmp.eq.s32.totalorder %s25, 0
      %p129 = por %p127, %p128
      %s131 = sadd.s32 %s130, 1
      %p134 = scmp.eq.s32.totalorder %s19, 1
      %p135 = scmp.ne.s32.totalorder %s130, %s132
      %p136 = scmp.eq.s32.totalorder %s19, 0
      %p137 = por %p135, %p136
      %p138 = scmp.ne.s32.totalorder %s130, %s132
      %p139 = scmp.eq.s32.totalorder %s24, 1
      %p140 = por %p138, %p139
      %p141 = scmp.ne.s32.totalorder %s132, %s133
      %p142 = scmp.eq.s32.totalorder %s24, 0
      %p143 = por %p141, %p142
      %p144 = scmp.ne.s32.totalorder %s132, %s133
      %p145 = scmp.eq.s32.totalorder %s25, 1
      %p146 = por %p144, %p145
      %p148 = scmp.ne.s32.totalorder %s133, %s147
      %p149 = scmp.eq.s32.totalorder %s25, 0
      %p150 = por %p148, %p149
      %s151 = ssub.s32 %s26, %s38
      %s152 = ssub.s32 %s27, %s34
      %s153 = sor.u32 %s151, %s152
      %p154 = scmp.eq.s32.totalorder %s153, 0
      %s156 = sadd.s32 %s155, 1
      %s157 = scalar_select %p154, %s155, %s156
      %p160 = pneg %p154
      %p161 = scmp.eq.s32.totalorder %s19, 1
      %p162 = por %p160, %p161
      %p163 = scmp.ne.s32.totalorder %s155, %s158
      %p164 = scmp.eq.s32.totalorder %s19, 0
      %p165 = por %p163, %p164
      %p166 = scmp.ne.s32.totalorder %s155, %s158
      %p167 = scmp.eq.s32.totalorder %s24, 1
      %p168 = por %p166, %p167
      %p169 = scmp.ne.s32.totalorder %s158, %s159
      %p170 = scmp.eq.s32.totalorder %s24, 0
      %p171 = por %p169, %p170
      %p172 = scmp.ne.s32.totalorder %s158, %s159
      %p173 = scmp.eq.s32.totalorder %s25, 1
      %p174 = por %p172, %p173
      %p176 = scmp.ne.s32.totalorder %s159, %s175
      %p177 = scmp.eq.s32.totalorder %s25, 0
      %p178 = por %p176, %p177
      %p179 = scmp.le.s32.totalorder 1, %s19
      %p180 = scmp.lt.s32.totalorder %s19, 3
      %p181 = pnand %p179, %p180
      %p182 = pneg %p181
      // Predicated region
      $region9: #{tpu_custom_call.1} parent=5 // pred_check
        _
      $region10: #{tpu_custom_call.1} parent=5 // pred_check_branch
        %184 = sbr.rel (%p181) target = $region12
      $region11: #{tpu_custom_call.1} parent=5 // pred_region
        %s185 = ssub.s32 %s19, 1
        // Predicated region
        $region13: #{tpu_custom_call.1} parent=11 // pred_check
          %p186 = pneg %p80
        $region14: #{tpu_custom_call.1} parent=11 // pred_check_branch
          %188 = sbr.rel (%p186) target = $region16
        $region15: #{tpu_custom_call.1} parent=11 // pred_region
          %s190 = ssub.s32 640, 640
          %191 = vsyncadd [#allocation6], %s190
          %s192 = sshll.u32 [#allocation5], 4
          %s193 = int_to_ptr.vmem [resolvable:$true] %s192
          %198 = dma.hbm_to_vmem [thread:$0]  %s1, 640, %s193, [#allocation6], 128, 128, 8
        $region16: #{tpu_custom_call.1} parent=11 // pred_fallthru
          _
        // Predicated region
        $region17: #{tpu_custom_call.1} parent=11 // pred_check
          %p199 = pneg %p101
        $region18: #{tpu_custom_call.1} parent=11 // pred_check_branch
          %201 = sbr.rel (%p199) target = $region20
        $region19: #{tpu_custom_call.1} parent=11 // pred_region
          %s203 = ssub.s32 640, 640
          %204 = vsyncadd [#allocation6], %s203
          %s205 = sshll.u32 [#allocation7], 4
          %s206 = int_to_ptr.vmem [resolvable:$true] %s205
          %211 = dma.hbm_to_vmem [thread:$0]  %s2, 640, %s206, [#allocation6], 128, 128, 8
        $region20: #{tpu_custom_call.1} parent=11 // pred_fallthru
          _
        // Predicated region
        $region21: #{tpu_custom_call.1} parent=11 // pred_check
          %p212 = pneg %p122
        $region22: #{tpu_custom_call.1} parent=11 // pred_check_branch
          %214 = sbr.rel (%p212) target = $region24
        $region23: #{tpu_custom_call.1} parent=11 // pred_region
          %s216 = ssub.s32 640, 640
          %217 = vsyncadd [#allocation9], %s216
          %s218 = sshll.u32 [#allocation8], 4
          %s219 = int_to_ptr.vmem [resolvable:$true] %s218
          %224 = dma.hbm_to_vmem [thread:$0]  %s3, 640, %s219, [#allocation9], 128, 128, 8
        $region24: #{tpu_custom_call.1} parent=11 // pred_fallthru
          _
        // Predicated region
        $region25: #{tpu_custom_call.1} parent=11 // pred_check
          %p225 = pneg %p143
        $region26: #{tpu_custom_call.1} parent=11 // pred_check_branch
          %227 = sbr.rel (%p225) target = $region28
        $region27: #{tpu_custom_call.1} parent=11 // pred_region
          %s229 = ssub.s32 640, 640
          %230 = vsyncadd [#allocation9], %s229
          %s231 = sshll.u32 [#allocation10], 4
          %s232 = int_to_ptr.vmem [resolvable:$true] %s231
          %237 = dma.hbm_to_vmem [thread:$0]  %s4, 640, %s232, [#allocation9], 128, 128, 8
        $region28: #{tpu_custom_call.1} parent=11 // pred_fallthru
          _
      $region12: #{tpu_custom_call.1} parent=5 // pred_fallthru
        _
      %p238 = scmp.lt.s32.totalorder %s19, 2
      // Predicated region
      $region29: #{tpu_custom_call.1} parent=5 // pred_check
        %p239 = pneg %p238
      $region30: #{tpu_custom_call.1} parent=5 // pred_check_branch
        %241 = sbr.rel (%p239) target = $region32
      $region31: #{tpu_custom_call.1} parent=5 // pred_region
        // Predicated region
        $region33: #{tpu_custom_call.1} parent=31 // pred_check
          %p242 = pneg %p53
        $region34: #{tpu_custom_call.1} parent=31 // pred_check_branch
          %244 = sbr.rel (%p242) target = $region36
        $region35: #{tpu_custom_call.1} parent=31 // pred_region
          %s245 = sand.u32 %s43, 1
          %s246 = scalar_lea.sflag [#allocation3], %s245
          %s247 = sand.u32 %s43, 1
          %s248 = smul.addr %s247, 20
          %s249 = scalar_lea.vmem [#allocation2], %s248
          %s251 = ssub.s32 320, 320
          %252 = vsyncadd %s246, %s251
          %s253 = smul.addr %s26, 5
          %s254 = sadd.s32 %s27, %s253
          %s255 = smul.addr %s254, 64
          %s256 = scalar_lea.hbm %s0, %s255
          %s257 = sshll.u32 %s249, 4
          %s258 = int_to_ptr.vmem [resolvable:$true] %s257
          %263 = dma.hbm_to_vmem [thread:$0]  %s256, 320, %s258, %s246, 64, 64, 4
        $region36: #{tpu_custom_call.1} parent=31 // pred_fallthru
          _
      $region32: #{tpu_custom_call.1} parent=5 // pred_fallthru
        _
      %p264 = scmp.le.s32.totalorder 1, %s19
      %p265 = scmp.lt.s32.totalorder %s19, 3
      %p266 = pnand %p264, %p265
      %p267 = pneg %p266
      // Predicated region
      $region37: #{tpu_custom_call.1} parent=5 // pred_check
        _
      $region38: #{tpu_custom_call.1} parent=5 // pred_check_branch
        %269 = sbr.rel (%p266) target = $region40
      $region39: #{tpu_custom_call.1} parent=5 // pred_region
        %s270 = ssub.s32 %s19, 1
        %s271 = sand.u32 %s46, 1
        %s272 = scalar_lea.sflag [#allocation3], %s271
        %s273 = sand.u32 %s46, 1
        %s274 = smul.addr %s273, 20
        %s275 = scalar_lea.vmem [#allocation2], %s274
        // Predicated region
        $region41: #{tpu_custom_call.1} parent=39 // pred_check
          %p276 = pneg %p59
        $region42: #{tpu_custom_call.1} parent=39 // pred_check_branch
          %278 = sbr.rel (%p276) target = $region44
        $region43: #{tpu_custom_call.1} parent=39 // pred_region
          %279 = dma.done %s272, 320
        $region44: #{tpu_custom_call.1} parent=39 // pred_fallthru
          _
        // Predicated region
        $region45: #{tpu_custom_call.1} parent=39 // pred_check
          %p280 = pneg %p80
        $region46: #{tpu_custom_call.1} parent=39 // pred_check_branch
          %282 = sbr.rel (%p280) target = $region48
        $region47: #{tpu_custom_call.1} parent=39 // pred_region
          %283 = dma.done [#allocation6], 640
        $region48: #{tpu_custom_call.1} parent=39 // pred_fallthru
          _
        // Predicated region
        $region49: #{tpu_custom_call.1} parent=39 // pred_check
          %p284 = pneg %p101
        $region50: #{tpu_custom_call.1} parent=39 // pred_check_branch
          %286 = sbr.rel (%p284) target = $region52
        $region51: #{tpu_custom_call.1} parent=39 // pred_region
          %287 = dma.done [#allocation6], 640
        $region52: #{tpu_custom_call.1} parent=39 // pred_fallthru
          _
        // Predicated region
        $region53: #{tpu_custom_call.1} parent=39 // pred_check
          %p288 = pneg %p122
        $region54: #{tpu_custom_call.1} parent=39 // pred_check_branch
          %290 = sbr.rel (%p288) target = $region56
        $region55: #{tpu_custom_call.1} parent=39 // pred_region
          %291 = dma.done [#allocation9], 640
        $region56: #{tpu_custom_call.1} parent=39 // pred_fallthru
          _
        // Predicated region
        $region57: #{tpu_custom_call.1} parent=39 // pred_check
          %p292 = pneg %p143
        $region58: #{tpu_custom_call.1} parent=39 // pred_check_branch
          %294 = sbr.rel (%p292) target = $region60
        $region59: #{tpu_custom_call.1} parent=39 // pred_region
          %295 = dma.done [#allocation9], 640
        $region60: #{tpu_custom_call.1} parent=39 // pred_fallthru
          _
        %s296 = sand.u32 %s46, 1
        %s297 = scalar_lea.sflag [#allocation3], %s296
        %s298 = sand.u32 %s46, 1
        %s299 = smul.addr %s298, 20
        %s300 = scalar_lea.vmem [#allocation2], %s299
        %p301 = pneg %p59
        %p302 = pneg %p56
        %p303 = pneg %p80
        %p304 = pneg %p77
        %p305 = pneg %p101
        %p306 = pneg %p98
        %p307 = pneg %p122
        %p308 = pneg %p119
        %p309 = pneg %p143
        %p310 = pneg %p140
        %p311 = pneg %p171
        %p312 = pneg %p168
        %s313 = sand.u32 %s158, 1
        %s314 = scalar_lea.sflag [#allocation4], %s313
        %s315 = sand.u32 %s158, 1
        %s316 = smul.addr %s315, 20
        %s317 = scalar_lea.vmem [#allocation11], %s316
        %v318 = vld [vmem:[#allocation5] sm:$0xff]
        %v319 = vld [vmem:[#allocation5 + $0x8] sm:$0xff]
        %v320 = vld [vmem:[#allocation5 + $0x10] sm:$0xff]
        %v321 = vld [vmem:[#allocation5 + $0x18] sm:$0xff]
        %v322 = vld [vmem:[#allocation5 + $0x20] sm:$0x1]
        %v323 = vld [vmem:[#allocation7] sm:$0xff]
        %v324 = vld [vmem:[#allocation7 + $0x8] sm:$0xff]
        %v325 = vld [vmem:[#allocation7 + $0x10] sm:$0xff]
        %v326 = vld [vmem:[#allocation7 + $0x18] sm:$0xff]
        %v327 = vld [vmem:[#allocation7 + $0x20] sm:$0x1]
        %v328 = vld [vmem:[#allocation8] sm:$0xff]
        %v329 = vld [vmem:[#allocation8 + $0x8] sm:$0xff]
        %v330 = vld [vmem:[#allocation8 + $0x10] sm:$0xff]
        %v331 = vld [vmem:[#allocation8 + $0x18] sm:$0xff]
        %v332 = vld [vmem:[#allocation8 + $0x20] sm:$0x1]
        %v333 = vld [vmem:[#allocation10] sm:$0xff]
        %v334 = vld [vmem:[#allocation10 + $0x8] sm:$0xff]
        %v335 = vld [vmem:[#allocation10 + $0x10] sm:$0xff]
        %v336 = vld [vmem:[#allocation10 + $0x18] sm:$0xff]
        %v337 = vld [vmem:[#allocation10 + $0x20] sm:$0x1]
        %v338 = vld [vmem:[%s275] sm:$0xf]
        %vm339 = vcmask 269312
        %v341 = vsel %vm339, %v338, 0
        %vm343 = vcmask 1040384
        %v345 = vsel %vm343, %v322, 0
        %347 = vmatprep.subr.mxu0 0.0
        %348 = vmatpush1.msra.mxu0 %v318
        %349 = vmatprep.subr.mxu0 0.0
        %350 = vmatpush1.msra.mxu0 %v319
        %351 = vmatprep.subr.mxu0 0.0
        %352 = vmatpush1.msra.mxu0 %v320
        %353 = vmatprep.subr.mxu0 0.0
        %354 = vmatpush1.msra.mxu0 %v321
        %355 = vmatprep.subr.mxu0 0.0
        %356 = vmatpush1.msra.mxu0 %v345
        %357 = vmatprep.subr.mxu0 0.0
        %358 = vmatpush1.msra.mxu0 0.0
        %359 = vmatprep.subr.mxu0 0.0
        %360 = vmatpush1.msra.mxu0 0.0
        %361 = vmatprep.subr.mxu0 0.0
        %362 = vmatpush1.msra.mxu0 0.0
        %363 = vmatprep.subr.mxu0 0.0
        %364 = vmatpush1.msra.mxu0 0.0
        %365 = vmatprep.subr.mxu0 0.0
        %366 = vmatpush1.msra.mxu0 0.0
        %367 = vmatprep.subr.mxu0 0.0
        %368 = vmatpush1.msra.mxu0 0.0
        %369 = vmatprep.subr.mxu0 0.0
        %370 = vmatpush1.msra.mxu0 0.0
        %371 = vmatprep.subr.mxu0 0.0
        %372 = vmatpush1.msra.mxu0 0.0
        %373 = vmatprep.subr.mxu0 0.0
        %374 = vmatpush1.msra.mxu0 0.0
        %375 = vmatprep.subr.mxu0 0.0
        %376 = vmatpush1.msra.mxu0 0.0
        %377 = vmatprep.subr.mxu0 0.0
        %378 = vmatpush1.msra.mxu0 0.0
        %379 = vmatprep.subr.mxu0 0.0
        %380 = vmatpush1.msra.mxu0 0.0
        %381 = vmatprep.subr.mxu0 0.0
        %382 = vmatpush1.msra.mxu0 0.0
        %383 = vmatprep.subr.mxu0 0.0
        %384 = vmatpush1.msra.mxu0 0.0
        %385 = vmatprep.subr.mxu0 0.0
        %386 = vmatpush1.msra.mxu0 0.0
        %387 = vmatprep.subr.mxu0 0.0
        %388 = vmatpush1.msra.mxu0 0.0
        %389 = vmatprep.subr.mxu0 0.0
        %390 = vmatpush1.msra.mxu0 0.0
        %391 = vmatprep.subr.mxu0 0.0
        %392 = vmatpush1.msra.mxu0 0.0
        %393 = vmatprep.subr.mxu0 0.0
        %394 = vmatpush1.msra.mxu0 0.0
        %395 = vmatprep.subr.mxu0 0.0
        %396 = vmatpush1.msra.mxu0 0.0
        %397 = vmatprep.subr.mxu0 0.0
        %398 = vmatpush1.msra.mxu0 0.0
        %399 = vmatprep.subr.mxu0 0.0
        %400 = vmatpush1.msra.mxu0 0.0
        %401 = vmatprep.subr.mxu0 0.0
        %402 = vmatpush1.msra.mxu0 0.0
        %403 = vmatprep.subr.mxu0 0.0
        %404 = vmatpush1.msra.mxu0 0.0
        %405 = vmatprep.subr.mxu0 0.0
        %406 = vmatpush1.msra.mxu0 0.0
        %407 = vmatprep.subr.mxu0 0.0
        %408 = vmatpush1.msra.mxu0 0.0
        %409 = vmatprep.subr.mxu0 0.0
        %410 = vmatpush1.msra.mxu0 0.0
        %411 = vmatprep.mubr.f32.mxu0 0.0
        %412 = vmatmul.mubr.f32.gmra.mrb[0].mxu0 %v341
        %v413 = vpop.f32.mrb[0].mxu0
        %v414 = vadd.f32 0.0, %v413
        %v415 = vpop.f32.mrb[0].mxu0
        %416 = vdwg.mxu0
        %v418 = vsel %vm343, %v327, 0
        %420 = vmatprep.subr.mxu0 0.0
        %421 = vmatpush1.msra.mxu0 %v323
        %422 = vmatprep.subr.mxu0 0.0
        %423 = vmatpush1.msra.mxu0 %v324
        %424 = vmatprep.subr.mxu0 0.0
        %425 = vmatpush1.msra.mxu0 %v325
        %426 = vmatprep.subr.mxu0 0.0
        %427 = vmatpush1.msra.mxu0 %v326
        %428 = vmatprep.subr.mxu0 0.0
        %429 = vmatpush1.msra.mxu0 %v418
        %430 = vmatprep.subr.mxu0 0.0
        %431 = vmatpush1.msra.mxu0 0.0
        %432 = vmatprep.subr.mxu0 0.0
        %433 = vmatpush1.msra.mxu0 0.0
        %434 = vmatprep.subr.mxu0 0.0
        %435 = vmatpush1.msra.mxu0 0.0
        %436 = vmatprep.subr.mxu0 0.0
        %437 = vmatpush1.msra.mxu0 0.0
        %438 = vmatprep.subr.mxu0 0.0
        %439 = vmatpush1.msra.mxu0 0.0
        %440 = vmatprep.subr.mxu0 0.0
        %441 = vmatpush1.msra.mxu0 0.0
        %442 = vmatprep.subr.mxu0 0.0
        %443 = vmatpush1.msra.mxu0 0.0
        %444 = vmatprep.subr.mxu0 0.0
        %445 = vmatpush1.msra.mxu0 0.0
        %446 = vmatprep.subr.mxu0 0.0
        %447 = vmatpush1.msra.mxu0 0.0
        %448 = vmatprep.subr.mxu0 0.0
        %449 = vmatpush1.msra.mxu0 0.0
        %450 = vmatprep.subr.mxu0 0.0
        %451 = vmatpush1.msra.mxu0 0.0
        %452 = vmatprep.subr.mxu0 0.0
        %453 = vmatpush1.msra.mxu0 0.0
        %454 = vmatprep.subr.mxu0 0.0
        %455 = vmatpush1.msra.mxu0 0.0
        %456 = vmatprep.subr.mxu0 0.0
        %457 = vmatpush1.msra.mxu0 0.0
        %458 = vmatprep.subr.mxu0 0.0
        %459 = vmatpush1.msra.mxu0 0.0
        %460 = vmatprep.subr.mxu0 0.0
        %461 = vmatpush1.msra.mxu0 0.0
        %462 = vmatprep.subr.mxu0 0.0
        %463 = vmatpush1.msra.mxu0 0.0
        %464 = vmatprep.subr.mxu0 0.0
        %465 = vmatpush1.msra.mxu0 0.0
        %466 = vmatprep.subr.mxu0 0.0
        %467 = vmatpush1.msra.mxu0 0.0
        %468 = vmatprep.subr.mxu0 0.0
        %469 = vmatpush1.msra.mxu0 0.0
        %470 = vmatprep.subr.mxu0 0.0
        %471 = vmatpush1.msra.mxu0 0.0
        %472 = vmatprep.subr.mxu0 0.0
        %473 = vmatpush1.msra.mxu0 0.0
        %474 = vmatprep.subr.mxu0 0.0
        %475 = vmatpush1.msra.mxu0 0.0
        %476 = vmatprep.subr.mxu0 0.0
        %477 = vmatpush1.msra.mxu0 0.0
        %478 = vmatprep.subr.mxu0 0.0
        %479 = vmatpush1.msra.mxu0 0.0
        %480 = vmatprep.subr.mxu0 0.0
        %481 = vmatpush1.msra.mxu0 0.0
        %482 = vmatprep.subr.mxu0 0.0
        %483 = vmatpush1.msra.mxu0 0.0
        %484 = vmatprep.mubr.f32.mxu0 0.0
        %485 = vmatmul.mubr.f32.gmra.mrb[0].mxu0 %v341
        %v486 = vpop.f32.mrb[0].mxu0
        %v487 = vadd.f32 0.0, %v486
        %v488 = vpop.f32.mrb[0].mxu0
        %489 = vdwg.mxu0
        %s490 = scalar_lea.vmem %s275, 4 [#allocation2]
        %v491 = vld [vmem:[%s490] sm:$0xf]
        %v493 = vsel %vm339, %v491, 0
        %495 = vmatprep.subr.mxu0 0.0
        %496 = vmatpush1.msra.mxu0 %v318
        %497 = vmatprep.subr.mxu0 0.0
        %498 = vmatpush1.msra.mxu0 %v319
        %499 = vmatprep.subr.mxu0 0.0
        %500 = vmatpush1.msra.mxu0 %v320
        %501 = vmatprep.subr.mxu0 0.0
        %502 = vmatpush1.msra.mxu0 %v321
        %503 = vmatprep.subr.mxu0 0.0
        %504 = vmatpush1.msra.mxu0 %v345
        %505 = vmatprep.subr.mxu0 0.0
        %506 = vmatpush1.msra.mxu0 0.0
        %507 = vmatprep.subr.mxu0 0.0
        %508 = vmatpush1.msra.mxu0 0.0
        %509 = vmatprep.subr.mxu0 0.0
        %510 = vmatpush1.msra.mxu0 0.0
        %511 = vmatprep.subr.mxu0 0.0
        %512 = vmatpush1.msra.mxu0 0.0
        %513 = vmatprep.subr.mxu0 0.0
        %514 = vmatpush1.msra.mxu0 0.0
        %515 = vmatprep.subr.mxu0 0.0
        %516 = vmatpush1.msra.mxu0 0.0
        %517 = vmatprep.subr.mxu0 0.0
        %518 = vmatpush1.msra.mxu0 0.0
        %519 = vmatprep.subr.mxu0 0.0
        %520 = vmatpush1.msra.mxu0 0.0
        %521 = vmatprep.subr.mxu0 0.0
        %522 = vmatpush1.msra.mxu0 0.0
        %523 = vmatprep.subr.mxu0 0.0
        %524 = vmatpush1.msra.mxu0 0.0
        %525 = vmatprep.subr.mxu0 0.0
        %526 = vmatpush1.msra.mxu0 0.0
        %527 = vmatprep.subr.mxu0 0.0
        %528 = vmatpush1.msra.mxu0 0.0
        %529 = vmatprep.subr.mxu0 0.0
        %530 = vmatpush1.msra.mxu0 0.0
        %531 = vmatprep.subr.mxu0 0.0
        %532 = vmatpush1.msra.mxu0 0.0
        %533 = vmatprep.subr.mxu0 0.0
        %534 = vmatpush1.msra.mxu0 0.0
        %535 = vmatprep.subr.mxu0 0.0
        %536 = vmatpush1.msra.mxu0 0.0
        %537 = vmatprep.subr.mxu0 0.0
        %538 = vmatpush1.msra.mxu0 0.0
        %539 = vmatprep.subr.mxu0 0.0
        %540 = vmatpush1.msra.mxu0 0.0
        %541 = vmatprep.subr.mxu0 0.0
        %542 = vmatpush1.msra.mxu0 0.0
        %543 = vmatprep.subr.mxu0 0.0
        %544 = vmatpush1.msra.mxu0 0.0
        %545 = vmatprep.subr.mxu0 0.0
        %546 = vmatpush1.msra.mxu0 0.0
        %547 = vmatprep.subr.mxu0 0.0
        %548 = vmatpush1.msra.mxu0 0.0
        %549 = vmatprep.subr.mxu0 0.0
        %550 = vmatpush1.msra.mxu0 0.0
        %551 = vmatprep.subr.mxu0 0.0
        %552 = vmatpush1.msra.mxu0 0.0
        %553 = vmatprep.subr.mxu0 0.0
        %554 = vmatpush1.msra.mxu0 0.0
        %555 = vmatprep.subr.mxu0 0.0
        %556 = vmatpush1.msra.mxu0 0.0
        %557 = vmatprep.subr.mxu0 0.0
        %558 = vmatpush1.msra.mxu0 0.0
        %559 = vmatprep.mubr.f32.mxu0 0.0
        %560 = vmatmul.mubr.f32.gmra.mrb[0].mxu0 %v493
        %v561 = vpop.f32.mrb[0].mxu0
        %v562 = vadd.f32 0.0, %v561
        %v563 = vpop.f32.mrb[0].mxu0
        %564 = vdwg.mxu0
        %565 = vmatprep.subr.mxu0 0.0
        %566 = vmatpush1.msra.mxu0 %v323
        %567 = vmatprep.subr.mxu0 0.0
        %568 = vmatpush1.msra.mxu0 %v324
        %569 = vmatprep.subr.mxu0 0.0
        %570 = vmatpush1.msra.mxu0 %v325
        %571 = vmatprep.subr.mxu0 0.0
        %572 = vmatpush1.msra.mxu0 %v326
        %573 = vmatprep.subr.mxu0 0.0
        %574 = vmatpush1.msra.mxu0 %v418
        %575 = vmatprep.subr.mxu0 0.0
        %576 = vmatpush1.msra.mxu0 0.0
        %577 = vmatprep.subr.mxu0 0.0
        %578 = vmatpush1.msra.mxu0 0.0
        %579 = vmatprep.subr.mxu0 0.0
        %580 = vmatpush1.msra.mxu0 0.0
        %581 = vmatprep.subr.mxu0 0.0
        %582 = vmatpush1.msra.mxu0 0.0
        %583 = vmatprep.subr.mxu0 0.0
        %584 = vmatpush1.msra.mxu0 0.0
        %585 = vmatprep.subr.mxu0 0.0
        %586 = vmatpush1.msra.mxu0 0.0
        %587 = vmatprep.subr.mxu0 0.0
        %588 = vmatpush1.msra.mxu0 0.0
        %589 = vmatprep.subr.mxu0 0.0
        %590 = vmatpush1.msra.mxu0 0.0
        %591 = vmatprep.subr.mxu0 0.0
        %592 = vmatpush1.msra.mxu0 0.0
        %593 = vmatprep.subr.mxu0 0.0
        %594 = vmatpush1.msra.mxu0 0.0
        %595 = vmatprep.subr.mxu0 0.0
        %596 = vmatpush1.msra.mxu0 0.0
        %597 = vmatprep.subr.mxu0 0.0
        %598 = vmatpush1.msra.mxu0 0.0
        %599 = vmatprep.subr.mxu0 0.0
        %600 = vmatpush1.msra.mxu0 0.0
        %601 = vmatprep.subr.mxu0 0.0
        %602 = vmatpush1.msra.mxu0 0.0
        %603 = vmatprep.subr.mxu0 0.0
        %604 = vmatpush1.msra.mxu0 0.0
        %605 = vmatprep.subr.mxu0 0.0
        %606 = vmatpush1.msra.mxu0 0.0
        %607 = vmatprep.subr.mxu0 0.0
        %608 = vmatpush1.msra.mxu0 0.0
        %609 = vmatprep.subr.mxu0 0.0
        %610 = vmatpush1.msra.mxu0 0.0
        %611 = vmatprep.subr.mxu0 0.0
        %612 = vmatpush1.msra.mxu0 0.0
        %613 = vmatprep.subr.mxu0 0.0
        %614 = vmatpush1.msra.mxu0 0.0
        %615 = vmatprep.subr.mxu0 0.0
        %616 = vmatpush1.msra.mxu0 0.0
        %617 = vmatprep.subr.mxu0 0.0
        %618 = vmatpush1.msra.mxu0 0.0
        %619 = vmatprep.subr.mxu0 0.0
        %620 = vmatpush1.msra.mxu0 0.0
        %621 = vmatprep.subr.mxu0 0.0
        %622 = vmatpush1.msra.mxu0 0.0
        %623 = vmatprep.subr.mxu0 0.0
        %624 = vmatpush1.msra.mxu0 0.0
        %625 = vmatprep.subr.mxu0 0.0
        %626 = vmatpush1.msra.mxu0 0.0
        %627 = vmatprep.subr.mxu0 0.0
        %628 = vmatpush1.msra.mxu0 0.0
        %629 = vmatprep.mubr.f32.mxu0 0.0
        %630 = vmatmul.mubr.f32.gmra.mrb[0].mxu0 %v493
        %v631 = vpop.f32.mrb[0].mxu0
        %v632 = vadd.f32 0.0, %v631
        %v633 = vpop.f32.mrb[0].mxu0
        %634 = vdwg.mxu0
        %s635 = scalar_lea.vmem %s275, 8 [#allocation2]
        %v636 = vld [vmem:[%s635] sm:$0xf]
        %v638 = vsel %vm339, %v636, 0
        %640 = vmatprep.subr.mxu0 0.0
        %641 = vmatpush1.msra.mxu0 %v318
        %642 = vmatprep.subr.mxu0 0.0
        %643 = vmatpush1.msra.mxu0 %v319
        %644 = vmatprep.subr.mxu0 0.0
        %645 = vmatpush1.msra.mxu0 %v320
        %646 = vmatprep.subr.mxu0 0.0
        %647 = vmatpush1.msra.mxu0 %v321
        %648 = vmatprep.subr.mxu0 0.0
        %649 = vmatpush1.msra.mxu0 %v345
        %650 = vmatprep.subr.mxu0 0.0
        %651 = vmatpush1.msra.mxu0 0.0
        %652 = vmatprep.subr.mxu0 0.0
        %653 = vmatpush1.msra.mxu0 0.0
        %654 = vmatprep.subr.mxu0 0.0
        %655 = vmatpush1.msra.mxu0 0.0
        %656 = vmatprep.subr.mxu0 0.0
        %657 = vmatpush1.msra.mxu0 0.0
        %658 = vmatprep.subr.mxu0 0.0
        %659 = vmatpush1.msra.mxu0 0.0
        %660 = vmatprep.subr.mxu0 0.0
        %661 = vmatpush1.msra.mxu0 0.0
        %662 = vmatprep.subr.mxu0 0.0
        %663 = vmatpush1.msra.mxu0 0.0
        %664 = vmatprep.subr.mxu0 0.0
        %665 = vmatpush1.msra.mxu0 0.0
        %666 = vmatprep.subr.mxu0 0.0
        %667 = vmatpush1.msra.mxu0 0.0
        %668 = vmatprep.subr.mxu0 0.0
        %669 = vmatpush1.msra.mxu0 0.0
        %670 = vmatprep.subr.mxu0 0.0
        %671 = vmatpush1.msra.mxu0 0.0
        %672 = vmatprep.subr.mxu0 0.0
        %673 = vmatpush1.msra.mxu0 0.0
        %674 = vmatprep.subr.mxu0 0.0
        %675 = vmatpush1.msra.mxu0 0.0
        %676 = vmatprep.subr.mxu0 0.0
        %677 = vmatpush1.msra.mxu0 0.0
        %678 = vmatprep.subr.mxu0 0.0
        %679 = vmatpush1.msra.mxu0 0.0
        %680 = vmatprep.subr.mxu0 0.0
        %681 = vmatpush1.msra.mxu0 0.0
        %682 = vmatprep.subr.mxu0 0.0
        %683 = vmatpush1.msra.mxu0 0.0
        %684 = vmatprep.subr.mxu0 0.0
        %685 = vmatpush1.msra.mxu0 0.0
        %686 = vmatprep.subr.mxu0 0.0
        %687 = vmatpush1.msra.mxu0 0.0
        %688 = vmatprep.subr.mxu0 0.0
        %689 = vmatpush1.msra.mxu0 0.0
        %690 = vmatprep.subr.mxu0 0.0
        %691 = vmatpush1.msra.mxu0 0.0
        %692 = vmatprep.subr.mxu0 0.0
        %693 = vmatpush1.msra.mxu0 0.0
        %694 = vmatprep.subr.mxu0 0.0
        %695 = vmatpush1.msra.mxu0 0.0
        %696 = vmatprep.subr.mxu0 0.0
        %697 = vmatpush1.msra.mxu0 0.0
        %698 = vmatprep.subr.mxu0 0.0
        %699 = vmatpush1.msra.mxu0 0.0
        %700 = vmatprep.subr.mxu0 0.0
        %701 = vmatpush1.msra.mxu0 0.0
        %702 = vmatprep.subr.mxu0 0.0
        %703 = vmatpush1.msra.mxu0 0.0
        %704 = vmatprep.mubr.f32.mxu0 0.0
        %705 = vmatmul.mubr.f32.gmra.mrb[0].mxu0 %v638
        %v706 = vpop.f32.mrb[0].mxu0
        %v707 = vadd.f32 0.0, %v706
        %v708 = vpop.f32.mrb[0].mxu0
        %709 = vdwg.mxu0
        %710 = vmatprep.subr.mxu0 0.0
        %711 = vmatpush1.msra.mxu0 %v323
        %712 = vmatprep.subr.mxu0 0.0
        %713 = vmatpush1.msra.mxu0 %v324
        %714 = vmatprep.subr.mxu0 0.0
        %715 = vmatpush1.msra.mxu0 %v325
        %716 = vmatprep.subr.mxu0 0.0
        %717 = vmatpush1.msra.mxu0 %v326
        %718 = vmatprep.subr.mxu0 0.0
        %719 = vmatpush1.msra.mxu0 %v418
        %720 = vmatprep.subr.mxu0 0.0
        %721 = vmatpush1.msra.mxu0 0.0
        %722 = vmatprep.subr.mxu0 0.0
        %723 = vmatpush1.msra.mxu0 0.0
        %724 = vmatprep.subr.mxu0 0.0
        %725 = vmatpush1.msra.mxu0 0.0
        %726 = vmatprep.subr.mxu0 0.0
        %727 = vmatpush1.msra.mxu0 0.0
        %728 = vmatprep.subr.mxu0 0.0
        %729 = vmatpush1.msra.mxu0 0.0
        %730 = vmatprep.subr.mxu0 0.0
        %731 = vmatpush1.msra.mxu0 0.0
        %732 = vmatprep.subr.mxu0 0.0
        %733 = vmatpush1.msra.mxu0 0.0
        %734 = vmatprep.subr.mxu0 0.0
        %735 = vmatpush1.msra.mxu0 0.0
        %736 = vmatprep.subr.mxu0 0.0
        %737 = vmatpush1.msra.mxu0 0.0
        %738 = vmatprep.subr.mxu0 0.0
        %739 = vmatpush1.msra.mxu0 0.0
        %740 = vmatprep.subr.mxu0 0.0
        %741 = vmatpush1.msra.mxu0 0.0
        %742 = vmatprep.subr.mxu0 0.0
        %743 = vmatpush1.msra.mxu0 0.0
        %744 = vmatprep.subr.mxu0 0.0
        %745 = vmatpush1.msra.mxu0 0.0
        %746 = vmatprep.subr.mxu0 0.0
        %747 = vmatpush1.msra.mxu0 0.0
        %748 = vmatprep.subr.mxu0 0.0
        %749 = vmatpush1.msra.mxu0 0.0
        %750 = vmatprep.subr.mxu0 0.0
        %751 = vmatpush1.msra.mxu0 0.0
        %752 = vmatprep.subr.mxu0 0.0
        %753 = vmatpush1.msra.mxu0 0.0
        %754 = vmatprep.subr.mxu0 0.0
        %755 = vmatpush1.msra.mxu0 0.0
        %756 = vmatprep.subr.mxu0 0.0
        %757 = vmatpush1.msra.mxu0 0.0
        %758 = vmatprep.subr.mxu0 0.0
        %759 = vmatpush1.msra.mxu0 0.0
        %760 = vmatprep.subr.mxu0 0.0
        %761 = vmatpush1.msra.mxu0 0.0
        %762 = vmatprep.subr.mxu0 0.0
        %763 = vmatpush1.msra.mxu0 0.0
        %764 = vmatprep.subr.mxu0 0.0
        %765 = vmatpush1.msra.mxu0 0.0
        %766 = vmatprep.subr.mxu0 0.0
        %767 = vmatpush1.msra.mxu0 0.0
        %768 = vmatprep.subr.mxu0 0.0
        %769 = vmatpush1.msra.mxu0 0.0
        %770 = vmatprep.subr.mxu0 0.0
        %771 = vmatpush1.msra.mxu0 0.0
        %772 = vmatprep.subr.mxu0 0.0
        %773 = vmatpush1.msra.mxu0 0.0
        %774 = vmatprep.mubr.f32.mxu0 0.0
        %775 = vmatmul.mubr.f32.gmra.mrb[0].mxu0 %v638
        %v776 = vpop.f32.mrb[0].mxu0
        %v777 = vadd.f32 0.0, %v776
        %v778 = vpop.f32.mrb[0].mxu0
        %779 = vdwg.mxu0
        %s780 = scalar_lea.vmem %s275, 12 [#allocation2]
        %v781 = vld [vmem:[%s780] sm:$0xf]
        %v783 = vsel %vm339, %v781, 0
        %785 = vmatprep.subr.mxu0 0.0
        %786 = vmatpush1.msra.mxu0 %v318
        %787 = vmatprep.subr.mxu0 0.0
        %788 = vmatpush1.msra.mxu0 %v319
        %789 = vmatprep.subr.mxu0 0.0
        %790 = vmatpush1.msra.mxu0 %v320
        %791 = vmatprep.subr.mxu0 0.0
        %792 = vmatpush1.msra.mxu0 %v321
        %793 = vmatprep.subr.mxu0 0.0
        %794 = vmatpush1.msra.mxu0 %v345
        %795 = vmatprep.subr.mxu0 0.0
        %796 = vmatpush1.msra.mxu0 0.0
        %797 = vmatprep.subr.mxu0 0.0
        %798 = vmatpush1.msra.mxu0 0.0
        %799 = vmatprep.subr.mxu0 0.0
        %800 = vmatpush1.msra.mxu0 0.0
        %801 = vmatprep.subr.mxu0 0.0
        %802 = vmatpush1.msra.mxu0 0.0
        %803 = vmatprep.subr.mxu0 0.0
        %804 = vmatpush1.msra.mxu0 0.0
        %805 = vmatprep.subr.mxu0 0.0
        %806 = vmatpush1.msra.mxu0 0.0
        %807 = vmatprep.subr.mxu0 0.0
        %808 = vmatpush1.msra.mxu0 0.0
        %809 = vmatprep.subr.mxu0 0.0
        %810 = vmatpush1.msra.mxu0 0.0
        %811 = vmatprep.subr.mxu0 0.0
        %812 = vmatpush1.msra.mxu0 0.0
        %813 = vmatprep.subr.mxu0 0.0
        %814 = vmatpush1.msra.mxu0 0.0
        %815 = vmatprep.subr.mxu0 0.0
        %816 = vmatpush1.msra.mxu0 0.0
        %817 = vmatprep.subr.mxu0 0.0
        %818 = vmatpush1.msra.mxu0 0.0
        %819 = vmatprep.subr.mxu0 0.0
        %820 = vmatpush1.msra.mxu0 0.0
        %821 = vmatprep.subr.mxu0 0.0
        %822 = vmatpush1.msra.mxu0 0.0
        %823 = vmatprep.subr.mxu0 0.0
        %824 = vmatpush1.msra.mxu0 0.0
        %825 = vmatprep.subr.mxu0 0.0
        %826 = vmatpush1.msra.mxu0 0.0
        %827 = vmatprep.subr.mxu0 0.0
        %828 = vmatpush1.msra.mxu0 0.0
        %829 = vmatprep.subr.mxu0 0.0
        %830 = vmatpush1.msra.mxu0 0.0
        %831 = vmatprep.subr.mxu0 0.0
        %832 = vmatpush1.msra.mxu0 0.0
        %833 = vmatprep.subr.mxu0 0.0
        %834 = vmatpush1.msra.mxu0 0.0
        %835 = vmatprep.subr.mxu0 0.0
        %836 = vmatpush1.msra.mxu0 0.0
        %837 = vmatprep.subr.mxu0 0.0
        %838 = vmatpush1.msra.mxu0 0.0
        %839 = vmatprep.subr.mxu0 0.0
        %840 = vmatpush1.msra.mxu0 0.0
        %841 = vmatprep.subr.mxu0 0.0
        %842 = vmatpush1.msra.mxu0 0.0
        %843 = vmatprep.subr.mxu0 0.0
        %844 = vmatpush1.msra.mxu0 0.0
        %845 = vmatprep.subr.mxu0 0.0
        %846 = vmatpush1.msra.mxu0 0.0
        %847 = vmatprep.subr.mxu0 0.0
        %848 = vmatpush1.msra.mxu0 0.0
        %849 = vmatprep.mubr.f32.mxu0 0.0
        %850 = vmatmul.mubr.f32.gmra.mrb[0].mxu0 %v783
        %v851 = vpop.f32.mrb[0].mxu0
        %v852 = vadd.f32 0.0, %v851
        %v853 = vpop.f32.mrb[0].mxu0
        %854 = vdwg.mxu0
        %855 = vmatprep.subr.mxu0 0.0
        %856 = vmatpush1.msra.mxu0 %v323
        %857 = vmatprep.subr.mxu0 0.0
        %858 = vmatpush1.msra.mxu0 %v324
        %859 = vmatprep.subr.mxu0 0.0
        %860 = vmatpush1.msra.mxu0 %v325
        %861 = vmatprep.subr.mxu0 0.0
        %862 = vmatpush1.msra.mxu0 %v326
        %863 = vmatprep.subr.mxu0 0.0
        %864 = vmatpush1.msra.mxu0 %v418
        %865 = vmatprep.subr.mxu0 0.0
        %866 = vmatpush1.msra.mxu0 0.0
        %867 = vmatprep.subr.mxu0 0.0
        %868 = vmatpush1.msra.mxu0 0.0
        %869 = vmatprep.subr.mxu0 0.0
        %870 = vmatpush1.msra.mxu0 0.0
        %871 = vmatprep.subr.mxu0 0.0
        %872 = vmatpush1.msra.mxu0 0.0
        %873 = vmatprep.subr.mxu0 0.0
        %874 = vmatpush1.msra.mxu0 0.0
        %875 = vmatprep.subr.mxu0 0.0
        %876 = vmatpush1.msra.mxu0 0.0
        %877 = vmatprep.subr.mxu0 0.0
        %878 = vmatpush1.msra.mxu0 0.0
        %879 = vmatprep.subr.mxu0 0.0
        %880 = vmatpush1.msra.mxu0 0.0
        %881 = vmatprep.subr.mxu0 0.0
        %882 = vmatpush1.msra.mxu0 0.0
        %883 = vmatprep.subr.mxu0 0.0
        %884 = vmatpush1.msra.mxu0 0.0
        %885 = vmatprep.subr.mxu0 0.0
        %886 = vmatpush1.msra.mxu0 0.0
        %887 = vmatprep.subr.mxu0 0.0
        %888 = vmatpush1.msra.mxu0 0.0
        %889 = vmatprep.subr.mxu0 0.0
        %890 = vmatpush1.msra.mxu0 0.0
        %891 = vmatprep.subr.mxu0 0.0
        %892 = vmatpush1.msra.mxu0 0.0
        %893 = vmatprep.subr.mxu0 0.0
        %894 = vmatpush1.msra.mxu0 0.0
        %895 = vmatprep.subr.mxu0 0.0
        %896 = vmatpush1.msra.mxu0 0.0
        %897 = vmatprep.subr.mxu0 0.0
        %898 = vmatpush1.msra.mxu0 0.0
        %899 = vmatprep.subr.mxu0 0.0
        %900 = vmatpush1.msra.mxu0 0.0
        %901 = vmatprep.subr.mxu0 0.0
        %902 = vmatpush1.msra.mxu0 0.0
        %903 = vmatprep.subr.mxu0 0.0
        %904 = vmatpush1.msra.mxu0 0.0
        %905 = vmatprep.subr.mxu0 0.0
        %906 = vmatpush1.msra.mxu0 0.0
        %907 = vmatprep.subr.mxu0 0.0
        %908 = vmatpush1.msra.mxu0 0.0
        %909 = vmatprep.subr.mxu0 0.0
        %910 = vmatpush1.msra.mxu0 0.0
        %911 = vmatprep.subr.mxu0 0.0
        %912 = vmatpush1.msra.mxu0 0.0
        %913 = vmatprep.subr.mxu0 0.0
        %914 = vmatpush1.msra.mxu0 0.0
        %915 = vmatprep.subr.mxu0 0.0
        %916 = vmatpush1.msra.mxu0 0.0
        %917 = vmatprep.subr.mxu0 0.0
        %918 = vmatpush1.msra.mxu0 0.0
        %919 = vmatprep.mubr.f32.mxu0 0.0
        %920 = vmatmul.mubr.f32.gmra.mrb[0].mxu0 %v783
        %v921 = vpop.f32.mrb[0].mxu0
        %v922 = vadd.f32 0.0, %v921
        %v923 = vpop.f32.mrb[0].mxu0
        %924 = vdwg.mxu0
        %s925 = scalar_lea.vmem %s275, 16 [#allocation2]
        %v926 = vld [vmem:[%s925] sm:$0xf]
        %v928 = vsel %vm339, %v926, 0
        %930 = vmatprep.subr.mxu0 0.0
        %931 = vmatpush1.msra.mxu0 %v318
        %932 = vmatprep.subr.mxu0 0.0
        %933 = vmatpush1.msra.mxu0 %v319
        %934 = vmatprep.subr.mxu0 0.0
        %935 = vmatpush1.msra.mxu0 %v320
        %936 = vmatprep.subr.mxu0 0.0
        %937 = vmatpush1.msra.mxu0 %v321
        %938 = vmatprep.subr.mxu0 0.0
        %939 = vmatpush1.msra.mxu0 %v345
        %940 = vmatprep.subr.mxu0 0.0
        %941 = vmatpush1.msra.mxu0 0.0
        %942 = vmatprep.subr.mxu0 0.0
        %943 = vmatpush1.msra.mxu0 0.0
        %944 = vmatprep.subr.mxu0 0.0
        %945 = vmatpush1.msra.mxu0 0.0
        %946 = vmatprep.subr.mxu0 0.0
        %947 = vmatpush1.msra.mxu0 0.0
        %948 = vmatprep.subr.mxu0 0.0
        %949 = vmatpush1.msra.mxu0 0.0
        %950 = vmatprep.subr.mxu0 0.0
        %951 = vmatpush1.msra.mxu0 0.0
        %952 = vmatprep.subr.mxu0 0.0
        %953 = vmatpush1.msra.mxu0 0.0
        %954 = vmatprep.subr.mxu0 0.0
        %955 = vmatpush1.msra.mxu0 0.0
        %956 = vmatprep.subr.mxu0 0.0
        %957 = vmatpush1.msra.mxu0 0.0
        %958 = vmatprep.subr.mxu0 0.0
        %959 = vmatpush1.msra.mxu0 0.0
        %960 = vmatprep.subr.mxu0 0.0
        %961 = vmatpush1.msra.mxu0 0.0
        %962 = vmatprep.subr.mxu0 0.0
        %963 = vmatpush1.msra.mxu0 0.0
        %964 = vmatprep.subr.mxu0 0.0
        %965 = vmatpush1.msra.mxu0 0.0
        %966 = vmatprep.subr.mxu0 0.0
        %967 = vmatpush1.msra.mxu0 0.0
        %968 = vmatprep.subr.mxu0 0.0
        %969 = vmatpush1.msra.mxu0 0.0
        %970 = vmatprep.subr.mxu0 0.0
        %971 = vmatpush1.msra.mxu0 0.0
        %972 = vmatprep.subr.mxu0 0.0
        %973 = vmatpush1.msra.mxu0 0.0
        %974 = vmatprep.subr.mxu0 0.0
        %975 = vmatpush1.msra.mxu0 0.0
        %976 = vmatprep.subr.mxu0 0.0
        %977 = vmatpush1.msra.mxu0 0.0
        %978 = vmatprep.subr.mxu0 0.0
        %979 = vmatpush1.msra.mxu0 0.0
        %980 = vmatprep.subr.mxu0 0.0
        %981 = vmatpush1.msra.mxu0 0.0
        %982 = vmatprep.subr.mxu0 0.0
        %983 = vmatpush1.msra.mxu0 0.0
        %984 = vmatprep.subr.mxu0 0.0
        %985 = vmatpush1.msra.mxu0 0.0
        %986 = vmatprep.subr.mxu0 0.0
        %987 = vmatpush1.msra.mxu0 0.0
        %988 = vmatprep.subr.mxu0 0.0
        %989 = vmatpush1.msra.mxu0 0.0
        %990 = vmatprep.subr.mxu0 0.0
        %991 = vmatpush1.msra.mxu0 0.0
        %992 = vmatprep.subr.mxu0 0.0
        %993 = vmatpush1.msra.mxu0 0.0
        %994 = vmatprep.mubr.f32.mxu0 0.0
        %995 = vmatmul.mubr.f32.gmra.mrb[0].mxu0 %v928
        %v996 = vpop.f32.mrb[0].mxu0
        %v997 = vadd.f32 0.0, %v996
        %v998 = vpop.f32.mrb[0].mxu0
        %999 = vdwg.mxu0
        %1000 = vmatprep.subr.mxu0 0.0
        %1001 = vmatpush1.msra.mxu0 %v323
        %1002 = vmatprep.subr.mxu0 0.0
        %1003 = vmatpush1.msra.mxu0 %v324
        %1004 = vmatprep.subr.mxu0 0.0
        %1005 = vmatpush1.msra.mxu0 %v325
        %1006 = vmatprep.subr.mxu0 0.0
        %1007 = vmatpush1.msra.mxu0 %v326
        %1008 = vmatprep.subr.mxu0 0.0
        %1009 = vmatpush1.msra.mxu0 %v418
        %1010 = vmatprep.subr.mxu0 0.0
        %1011 = vmatpush1.msra.mxu0 0.0
        %1012 = vmatprep.subr.mxu0 0.0
        %1013 = vmatpush1.msra.mxu0 0.0
        %1014 = vmatprep.subr.mxu0 0.0
        %1015 = vmatpush1.msra.mxu0 0.0
        %1016 = vmatprep.subr.mxu0 0.0
        %1017 = vmatpush1.msra.mxu0 0.0
        %1018 = vmatprep.subr.mxu0 0.0
        %1019 = vmatpush1.msra.mxu0 0.0
        %1020 = vmatprep.subr.mxu0 0.0
        %1021 = vmatpush1.msra.mxu0 0.0
        %1022 = vmatprep.subr.mxu0 0.0
        %1023 = vmatpush1.msra.mxu0 0.0
        %1024 = vmatprep.subr.mxu0 0.0
        %1025 = vmatpush1.msra.mxu0 0.0
        %1026 = vmatprep.subr.mxu0 0.0
        %1027 = vmatpush1.msra.mxu0 0.0
        %1028 = vmatprep.subr.mxu0 0.0
        %1029 = vmatpush1.msra.mxu0 0.0
        %1030 = vmatprep.subr.mxu0 0.0
        %1031 = vmatpush1.msra.mxu0 0.0
        %1032 = vmatprep.subr.mxu0 0.0
        %1033 = vmatpush1.msra.mxu0 0.0
        %1034 = vmatprep.subr.mxu0 0.0
        %1035 = vmatpush1.msra.mxu0 0.0
        %1036 = vmatprep.subr.mxu0 0.0
        %1037 = vmatpush1.msra.mxu0 0.0
        %1038 = vmatprep.subr.mxu0 0.0
        %1039 = vmatpush1.msra.mxu0 0.0
        %1040 = vmatprep.subr.mxu0 0.0
        %1041 = vmatpush1.msra.mxu0 0.0
        %1042 = vmatprep.subr.mxu0 0.0
        %1043 = vmatpush1.msra.mxu0 0.0
        %1044 = vmatprep.subr.mxu0 0.0
        %1045 = vmatpush1.msra.mxu0 0.0
        %1046 = vmatprep.subr.mxu0 0.0
        %1047 = vmatpush1.msra.mxu0 0.0
        %1048 = vmatprep.subr.mxu0 0.0
        %1049 = vmatpush1.msra.mxu0 0.0
        %1050 = vmatprep.subr.mxu0 0.0
        %1051 = vmatpush1.msra.mxu0 0.0
        %1052 = vmatprep.subr.mxu0 0.0
        %1053 = vmatpush1.msra.mxu0 0.0
        %1054 = vmatprep.subr.mxu0 0.0
        %1055 = vmatpush1.msra.mxu0 0.0
        %1056 = vmatprep.subr.mxu0 0.0
        %1057 = vmatpush1.msra.mxu0 0.0
        %1058 = vmatprep.subr.mxu0 0.0
        %1059 = vmatpush1.msra.mxu0 0.0
        %1060 = vmatprep.subr.mxu0 0.0
        %1061 = vmatpush1.msra.mxu0 0.0
        %1062 = vmatprep.subr.mxu0 0.0
        %1063 = vmatpush1.msra.mxu0 0.0
        %1064 = vmatprep.mubr.f32.mxu0 0.0
        %1065 = vmatmul.mubr.f32.gmra.mrb[0].mxu0 %v928
        %v1066 = vpop.f32.mrb[0].mxu0
        %v1067 = vadd.f32 0.0, %v1066
        %v1068 = vpop.f32.mrb[0].mxu0
        %1069 = vdwg.mxu0
        %v1070 = vmul.f32 %v414, 0.4472136
        %v1071 = vmul.f32 %v487, 0.4472136
        %v1072 = vmul.f32 %v562, 0.4472136
        %v1073 = vadd.f32 %v1070, %v1072
        %v1074 = vmul.f32 %v632, 0.4472136
        %v1075 = vadd.f32 %v1071, %v1074
        %v1076 = vmul.f32 %v707, 0.4472136
        %v1077 = vadd.f32 %v1073, %v1076
        %v1078 = vmul.f32 %v777, 0.4472136
        %v1079 = vadd.f32 %v1075, %v1078
        %v1080 = vmul.f32 %v852, 0.4472136
        %v1081 = vadd.f32 %v1077, %v1080
        %v1082 = vmul.f32 %v922, 0.4472136
        %v1083 = vadd.f32 %v1079, %v1082
        %v1084 = vmul.f32 %v997, 0.4472136
        %v1085 = vadd.f32 %v1081, %v1084
        %v1086 = vmul.f32 %v1067, 0.4472136
        %v1087 = vadd.f32 %v1083, %v1086
        %v1088 = vmul.f32 %v1085, %v1085
        %v1089 = vmul.f32 %v1087, %v1087
        %v1090 = vadd.f32 %v1088, %v1089
        %v1091 = vmul.f32 %v562, 0.1381966
        %v1092 = vadd.f32 %v1070, %v1091
        %v1093 = vmul.f32 %v632, 0.1381966
        %v1094 = vadd.f32 %v1071, %v1093
        %v1095 = vmul.f32 %v632, -0.4253254
        %v1096 = vsub.f32 %v1092, %v1095
        %v1097 = vmul.f32 %v562, -0.4253254
        %v1098 = vadd.f32 %v1094, %v1097
        %v1099 = vmul.f32 %v707, -0.3618034
        %v1100 = vadd.f32 %v1096, %v1099
        %v1101 = vmul.f32 %v777, -0.3618034
        %v1102 = vadd.f32 %v1098, %v1101
        %v1103 = vmul.f32 %v777, -0.26286554
        %v1104 = vsub.f32 %v1100, %v1103
        %v1105 = vmul.f32 %v707, -0.26286554
        %v1106 = vadd.f32 %v1102, %v1105
        %v1107 = vmul.f32 %v852, -0.3618034
        %v1108 = vadd.f32 %v1104, %v1107
        %v1109 = vmul.f32 %v922, -0.3618034
        %v1110 = vadd.f32 %v1106, %v1109
        %v1111 = vmul.f32 %v922, 0.26286554
        %v1112 = vsub.f32 %v1108, %v1111
        %v1113 = vmul.f32 %v852, 0.26286554
        %v1114 = vadd.f32 %v1110, %v1113
        %v1115 = vmul.f32 %v997, 0.1381966
        %v1116 = vadd.f32 %v1112, %v1115
        %v1117 = vmul.f32 %v1067, 0.1381966
        %v1118 = vadd.f32 %v1114, %v1117
        %v1119 = vmul.f32 %v1067, 0.4253254
        %v1120 = vsub.f32 %v1116, %v1119
        %v1121 = vmul.f32 %v997, 0.4253254
        %v1122 = vadd.f32 %v1118, %v1121
        %v1123 = vmul.f32 %v1120, %v1120
        %v1124 = vmul.f32 %v1122, %v1122
        %v1125 = vadd.f32 %v1123, %v1124
        %v1126 = vmul.f32 %v562, -0.3618034
        %v1127 = vadd.f32 %v1070, %v1126
        %v1128 = vmul.f32 %v632, -0.3618034
        %v1129 = vadd.f32 %v1071, %v1128
        %v1130 = vmul.f32 %v632, -0.26286554
        %v1131 = vsub.f32 %v1127, %v1130
        %v1132 = vmul.f32 %v562, -0.26286554
        %v1133 = vadd.f32 %v1129, %v1132
        %v1134 = vmul.f32 %v707, 0.1381966
        %v1135 = vadd.f32 %v1131, %v1134
        %v1136 = vmul.f32 %v777, 0.1381966
        %v1137 = vadd.f32 %v1133, %v1136
        %v1138 = vmul.f32 %v777, 0.4253254
        %v1139 = vsub.f32 %v1135, %v1138
        %v1140 = vmul.f32 %v707, 0.4253254
        %v1141 = vadd.f32 %v1137, %v1140
        %v1142 = vmul.f32 %v852, 0.1381966
        %v1143 = vadd.f32 %v1139, %v1142
        %v1144 = vmul.f32 %v922, 0.1381966
        %v1145 = vadd.f32 %v1141, %v1144
        %v1146 = vmul.f32 %v922, -0.4253254
        %v1147 = vsub.f32 %v1143, %v1146
        %v1148 = vmul.f32 %v852, -0.4253254
        %v1149 = vadd.f32 %v1145, %v1148
        %v1150 = vmul.f32 %v997, -0.3618034
        %v1151 = vadd.f32 %v1147, %v1150
        %v1152 = vmul.f32 %v1067, -0.3618034
        %v1153 = vadd.f32 %v1149, %v1152
        %v1154 = vmul.f32 %v1067, 0.26286554
        %v1155 = vsub.f32 %v1151, %v1154
        %v1156 = vmul.f32 %v997, 0.26286554
        %v1157 = vadd.f32 %v1153, %v1156
        %v1158 = vmul.f32 %v1155, %v1155
        %v1159 = vmul.f32 %v1157, %v1157
        %v1160 = vadd.f32 %v1158, %v1159
        %v1161 = vmul.f32 %v632, 0.26286554
        %v1162 = vsub.f32 %v1127, %v1161
        %v1163 = vmul.f32 %v562, 0.26286554
        %v1164 = vadd.f32 %v1129, %v1163
        %v1165 = vadd.f32 %v1162, %v1134
        %v1166 = vadd.f32 %v1164, %v1136
        %v1167 = vmul.f32 %v777, -0.4253254
        %v1168 = vsub.f32 %v1165, %v1167
        %v1169 = vmul.f32 %v707, -0.4253254
        %v1170 = vadd.f32 %v1166, %v1169
        %v1171 = vadd.f32 %v1168, %v1142
        %v1172 = vadd.f32 %v1170, %v1144
        %v1173 = vmul.f32 %v922, 0.4253254
        %v1174 = vsub.f32 %v1171, %v1173
        %v1175 = vmul.f32 %v852, 0.4253254
        %v1176 = vadd.f32 %v1172, %v1175
        %v1177 = vadd.f32 %v1174, %v1150
        %v1178 = vadd.f32 %v1176, %v1152
        %v1179 = vmul.f32 %v1067, -0.26286554
        %v1180 = vsub.f32 %v1177, %v1179
        %v1181 = vmul.f32 %v997, -0.26286554
        %v1182 = vadd.f32 %v1178, %v1181
        %v1183 = vmul.f32 %v1180, %v1180
        %v1184 = vmul.f32 %v1182, %v1182
        %v1185 = vadd.f32 %v1183, %v1184
        %v1186 = vmul.f32 %v632, 0.4253254
        %v1187 = vsub.f32 %v1092, %v1186
        %v1188 = vmul.f32 %v562, 0.4253254
        %v1189 = vadd.f32 %v1094, %v1188
        %v1190 = vadd.f32 %v1187, %v1099
        %v1191 = vadd.f32 %v1189, %v1101
        %v1192 = vmul.f32 %v777, 0.26286554
        %v1193 = vsub.f32 %v1190, %v1192
        %v1194 = vmul.f32 %v707, 0.26286554
        %v1195 = vadd.f32 %v1191, %v1194
        %v1196 = vadd.f32 %v1193, %v1107
        %v1197 = vadd.f32 %v1195, %v1109
        %v1198 = vmul.f32 %v922, -0.26286554
        %v1199 = vsub.f32 %v1196, %v1198
        %v1200 = vmul.f32 %v852, -0.26286554
        %v1201 = vadd.f32 %v1197, %v1200
        %v1202 = vadd.f32 %v1199, %v1115
        %v1203 = vadd.f32 %v1201, %v1117
        %v1204 = vmul.f32 %v1067, -0.4253254
        %v1205 = vsub.f32 %v1202, %v1204
        %v1206 = vmul.f32 %v997, -0.4253254
        %v1207 = vadd.f32 %v1203, %v1206
        %v1208 = vmul.f32 %v1205, %v1205
        %v1209 = vmul.f32 %v1207, %v1207
        %v1210 = vadd.f32 %v1208, %v1209
        %v1211 = vmul.f32 %v1090, 0.4472136
        %v1212 = vmul.f32 %v1125, 0.4472136
        %v1213 = vadd.f32 %v1211, %v1212
        %v1214 = vmul.f32 %v1160, 0.4472136
        %v1215 = vadd.f32 %v1213, %v1214
        %v1216 = vmul.f32 %v1185, 0.4472136
        %v1217 = vadd.f32 %v1215, %v1216
        %v1218 = vmul.f32 %v1210, 0.4472136
        %v1219 = vadd.f32 %v1217, %v1218
        %v1221 = vsel %vm339, %v1219, 0
        %v1224 = vsel %vm343, %v332, 0
        %1226 = vmatprep.subr.mxu0 0.0
        %1227 = vmatpush1.msra.mxu0 %v328
        %1228 = vmatprep.subr.mxu0 0.0
        %1229 = vmatpush1.msra.mxu0 %v329
        %1230 = vmatprep.subr.mxu0 0.0
        %1231 = vmatpush1.msra.mxu0 %v330
        %1232 = vmatprep.subr.mxu0 0.0
        %1233 = vmatpush1.msra.mxu0 %v331
        %1234 = vmatprep.subr.mxu0 0.0
        %1235 = vmatpush1.msra.mxu0 %v1224
        %1236 = vmatprep.subr.mxu0 0.0
        %1237 = vmatpush1.msra.mxu0 0.0
        %1238 = vmatprep.subr.mxu0 0.0
        %1239 = vmatpush1.msra.mxu0 0.0
        %1240 = vmatprep.subr.mxu0 0.0
        %1241 = vmatpush1.msra.mxu0 0.0
        %1242 = vmatprep.subr.mxu0 0.0
        %1243 = vmatpush1.msra.mxu0 0.0
        %1244 = vmatprep.subr.mxu0 0.0
        %1245 = vmatpush1.msra.mxu0 0.0
        %1246 = vmatprep.subr.mxu0 0.0
        %1247 = vmatpush1.msra.mxu0 0.0
        %1248 = vmatprep.subr.mxu0 0.0
        %1249 = vmatpush1.msra.mxu0 0.0
        %1250 = vmatprep.subr.mxu0 0.0
        %1251 = vmatpush1.msra.mxu0 0.0
        %1252 = vmatprep.subr.mxu0 0.0
        %1253 = vmatpush1.msra.mxu0 0.0
        %1254 = vmatprep.subr.mxu0 0.0
        %1255 = vmatpush1.msra.mxu0 0.0
        %1256 = vmatprep.subr.mxu0 0.0
        %1257 = vmatpush1.msra.mxu0 0.0
        %1258 = vmatprep.subr.mxu0 0.0
        %1259 = vmatpush1.msra.mxu0 0.0
        %1260 = vmatprep.subr.mxu0 0.0
        %1261 = vmatpush1.msra.mxu0 0.0
        %1262 = vmatprep.subr.mxu0 0.0
        %1263 = vmatpush1.msra.mxu0 0.0
        %1264 = vmatprep.subr.mxu0 0.0
        %1265 = vmatpush1.msra.mxu0 0.0
        %1266 = vmatprep.subr.mxu0 0.0
        %1267 = vmatpush1.msra.mxu0 0.0
        %1268 = vmatprep.subr.mxu0 0.0
        %1269 = vmatpush1.msra.mxu0 0.0
        %1270 = vmatprep.subr.mxu0 0.0
        %1271 = vmatpush1.msra.mxu0 0.0
        %1272 = vmatprep.subr.mxu0 0.0
        %1273 = vmatpush1.msra.mxu0 0.0
        %1274 = vmatprep.subr.mxu0 0.0
        %1275 = vmatpush1.msra.mxu0 0.0
        %1276 = vmatprep.subr.mxu0 0.0
        %1277 = vmatpush1.msra.mxu0 0.0
        %1278 = vmatprep.subr.mxu0 0.0
        %1279 = vmatpush1.msra.mxu0 0.0
        %1280 = vmatprep.subr.mxu0 0.0
        %1281 = vmatpush1.msra.mxu0 0.0
        %1282 = vmatprep.subr.mxu0 0.0
        %1283 = vmatpush1.msra.mxu0 0.0
        %1284 = vmatprep.subr.mxu0 0.0
        %1285 = vmatpush1.msra.mxu0 0.0
        %1286 = vmatprep.subr.mxu0 0.0
        %1287 = vmatpush1.msra.mxu0 0.0
        %1288 = vmatprep.subr.mxu0 0.0
        %1289 = vmatpush1.msra.mxu0 0.0
        %1290 = vmatprep.mubr.f32.mxu0 0.0
        %1291 = vmatmul.mubr.f32.gmra.mrb[0].mxu0 %v1221
        %v1292 = vpop.f32.mrb[0].mxu0
        %v1293 = vadd.f32 0.0, %v1292
        %v1294 = vpop.f32.mrb[0].mxu0
        %1295 = vdwg.mxu0
        %vm1296 = vcmask 535552
        %1297 = vst.msk [vmem:[%s317] sm:$0xf] %vm1296, %v1293
        %v1298 = vmul.f32 %v1125, 0.1381966
        %v1299 = vadd.f32 %v1211, %v1298
        %v1300 = vmul.f32 %v1125, 0.4253254
        %v1301 = vmul.f32 %v1160, -0.3618034
        %v1302 = vadd.f32 %v1299, %v1301
        %v1303 = vmul.f32 %v1160, -0.26286554
        %v1304 = vsub.f32 %v1300, %v1303
        %v1305 = vmul.f32 %v1185, -0.3618034
        %v1306 = vadd.f32 %v1302, %v1305
        %v1307 = vmul.f32 %v1185, 0.26286554
        %v1308 = vsub.f32 %v1304, %v1307
        %v1309 = vmul.f32 %v1210, 0.1381966
        %v1310 = vadd.f32 %v1306, %v1309
        %v1311 = vmul.f32 %v1210, 0.4253254
        %v1312 = vsub.f32 %v1308, %v1311
        %v1314 = vsel %vm339, %v1312, 0
        %v1317 = vsel %vm343, %v337, 0
        %1319 = vmatprep.subr.mxu0 0.0
        %1320 = vmatpush1.msra.mxu0 %v333
        %1321 = vmatprep.subr.mxu0 0.0
        %1322 = vmatpush1.msra.mxu0 %v334
        %1323 = vmatprep.subr.mxu0 0.0
        %1324 = vmatpush1.msra.mxu0 %v335
        %1325 = vmatprep.subr.mxu0 0.0
        %1326 = vmatpush1.msra.mxu0 %v336
        %1327 = vmatprep.subr.mxu0 0.0
        %1328 = vmatpush1.msra.mxu0 %v1317
        %1329 = vmatprep.subr.mxu0 0.0
        %1330 = vmatpush1.msra.mxu0 0.0
        %1331 = vmatprep.subr.mxu0 0.0
        %1332 = vmatpush1.msra.mxu0 0.0
        %1333 = vmatprep.subr.mxu0 0.0
        %1334 = vmatpush1.msra.mxu0 0.0
        %1335 = vmatprep.subr.mxu0 0.0
        %1336 = vmatpush1.msra.mxu0 0.0
        %1337 = vmatprep.subr.mxu0 0.0
        %1338 = vmatpush1.msra.mxu0 0.0
        %1339 = vmatprep.subr.mxu0 0.0
        %1340 = vmatpush1.msra.mxu0 0.0
        %1341 = vmatprep.subr.mxu0 0.0
        %1342 = vmatpush1.msra.mxu0 0.0
        %1343 = vmatprep.subr.mxu0 0.0
        %1344 = vmatpush1.msra.mxu0 0.0
        %1345 = vmatprep.subr.mxu0 0.0
        %1346 = vmatpush1.msra.mxu0 0.0
        %1347 = vmatprep.subr.mxu0 0.0
        %1348 = vmatpush1.msra.mxu0 0.0
        %1349 = vmatprep.subr.mxu0 0.0
        %1350 = vmatpush1.msra.mxu0 0.0
        %1351 = vmatprep.subr.mxu0 0.0
        %1352 = vmatpush1.msra.mxu0 0.0
        %1353 = vmatprep.subr.mxu0 0.0
        %1354 = vmatpush1.msra.mxu0 0.0
        %1355 = vmatprep.subr.mxu0 0.0
        %1356 = vmatpush1.msra.mxu0 0.0
        %1357 = vmatprep.subr.mxu0 0.0
        %1358 = vmatpush1.msra.mxu0 0.0
        %1359 = vmatprep.subr.mxu0 0.0
        %1360 = vmatpush1.msra.mxu0 0.0
        %1361 = vmatprep.subr.mxu0 0.0
        %1362 = vmatpush1.msra.mxu0 0.0
        %1363 = vmatprep.subr.mxu0 0.0
        %1364 = vmatpush1.msra.mxu0 0.0
        %1365 = vmatprep.subr.mxu0 0.0
        %1366 = vmatpush1.msra.mxu0 0.0
        %1367 = vmatprep.subr.mxu0 0.0
        %1368 = vmatpush1.msra.mxu0 0.0
        %1369 = vmatprep.subr.mxu0 0.0
        %1370 = vmatpush1.msra.mxu0 0.0
        %1371 = vmatprep.subr.mxu0 0.0
        %1372 = vmatpush1.msra.mxu0 0.0
        %1373 = vmatprep.subr.mxu0 0.0
        %1374 = vmatpush1.msra.mxu0 0.0
        %1375 = vmatprep.subr.mxu0 0.0
        %1376 = vmatpush1.msra.mxu0 0.0
        %1377 = vmatprep.subr.mxu0 0.0
        %1378 = vmatpush1.msra.mxu0 0.0
        %1379 = vmatprep.subr.mxu0 0.0
        %1380 = vmatpush1.msra.mxu0 0.0
        %1381 = vmatprep.subr.mxu0 0.0
        %1382 = vmatpush1.msra.mxu0 0.0
        %1383 = vmatprep.mubr.f32.mxu0 0.0
        %1384 = vmatmul.mubr.f32.gmra.mrb[0].mxu0 %v1314
        %v1385 = vpop.f32.mrb[0].mxu0
        %v1386 = vadd.f32 0.0, %v1385
        %v1387 = vpop.f32.mrb[0].mxu0
        %1388 = vdwg.mxu0
        %v1390 = vsel %vm339, %v1310, 0
        %1392 = vmatprep.subr.mxu0 0.0
        %1393 = vmatpush1.msra.mxu0 %v328
        %1394 = vmatprep.subr.mxu0 0.0
        %1395 = vmatpush1.msra.mxu0 %v329
        %1396 = vmatprep.subr.mxu0 0.0
        %1397 = vmatpush1.msra.mxu0 %v330
        %1398 = vmatprep.subr.mxu0 0.0
        %1399 = vmatpush1.msra.mxu0 %v331
        %1400 = vmatprep.subr.mxu0 0.0
        %1401 = vmatpush1.msra.mxu0 %v1224
        %1402 = vmatprep.subr.mxu0 0.0
        %1403 = vmatpush1.msra.mxu0 0.0
        %1404 = vmatprep.subr.mxu0 0.0
        %1405 = vmatpush1.msra.mxu0 0.0
        %1406 = vmatprep.subr.mxu0 0.0
        %1407 = vmatpush1.msra.mxu0 0.0
        %1408 = vmatprep.subr.mxu0 0.0
        %1409 = vmatpush1.msra.mxu0 0.0
        %1410 = vmatprep.subr.mxu0 0.0
        %1411 = vmatpush1.msra.mxu0 0.0
        %1412 = vmatprep.subr.mxu0 0.0
        %1413 = vmatpush1.msra.mxu0 0.0
        %1414 = vmatprep.subr.mxu0 0.0
        %1415 = vmatpush1.msra.mxu0 0.0
        %1416 = vmatprep.subr.mxu0 0.0
        %1417 = vmatpush1.msra.mxu0 0.0
        %1418 = vmatprep.subr.mxu0 0.0
        %1419 = vmatpush1.msra.mxu0 0.0
        %1420 = vmatprep.subr.mxu0 0.0
        %1421 = vmatpush1.msra.mxu0 0.0
        %1422 = vmatprep.subr.mxu0 0.0
        %1423 = vmatpush1.msra.mxu0 0.0
        %1424 = vmatprep.subr.mxu0 0.0
        %1425 = vmatpush1.msra.mxu0 0.0
        %1426 = vmatprep.subr.mxu0 0.0
        %1427 = vmatpush1.msra.mxu0 0.0
        %1428 = vmatprep.subr.mxu0 0.0
        %1429 = vmatpush1.msra.mxu0 0.0
        %1430 = vmatprep.subr.mxu0 0.0
        %1431 = vmatpush1.msra.mxu0 0.0
        %1432 = vmatprep.subr.mxu0 0.0
        %1433 = vmatpush1.msra.mxu0 0.0
        %1434 = vmatprep.subr.mxu0 0.0
        %1435 = vmatpush1.msra.mxu0 0.0
        %1436 = vmatprep.subr.mxu0 0.0
        %1437 = vmatpush1.msra.mxu0 0.0
        %1438 = vmatprep.subr.mxu0 0.0
        %1439 = vmatpush1.msra.mxu0 0.0
        %1440 = vmatprep.subr.mxu0 0.0
        %1441 = vmatpush1.msra.mxu0 0.0
        %1442 = vmatprep.subr.mxu0 0.0
        %1443 = vmatpush1.msra.mxu0 0.0
        %1444 = vmatprep.subr.mxu0 0.0
        %1445 = vmatpush1.msra.mxu0 0.0
        %1446 = vmatprep.subr.mxu0 0.0
        %1447 = vmatpush1.msra.mxu0 0.0
        %1448 = vmatprep.subr.mxu0 0.0
        %1449 = vmatpush1.msra.mxu0 0.0
        %1450 = vmatprep.subr.mxu0 0.0
        %1451 = vmatpush1.msra.mxu0 0.0
        %1452 = vmatprep.subr.mxu0 0.0
        %1453 = vmatpush1.msra.mxu0 0.0
        %1454 = vmatprep.subr.mxu0 0.0
        %1455 = vmatpush1.msra.mxu0 0.0
        %1456 = vmatprep.mubr.f32.mxu0 0.0
        %1457 = vmatmul.mubr.f32.gmra.mrb[0].mxu0 %v1390
        %v1458 = vpop.f32.mrb[0].mxu0
        %v1459 = vadd.f32 %v1386, %v1458
        %v1460 = vpop.f32.mrb[0].mxu0
        %1461 = vdwg.mxu0
        %s1462 = scalar_lea.vmem %s317, 4 [#allocation11]
        %1463 = vst.msk [vmem:[%s1462] sm:$0xf] %vm1296, %v1459
        %v1464 = vmul.f32 %v1125, -0.3618034
        %v1465 = vadd.f32 %v1211, %v1464
        %v1466 = vmul.f32 %v1125, 0.26286554
        %v1467 = vmul.f32 %v1160, 0.1381966
        %v1468 = vadd.f32 %v1465, %v1467
        %v1469 = vmul.f32 %v1160, 0.4253254
        %v1470 = vsub.f32 %v1466, %v1469
        %v1471 = vmul.f32 %v1185, 0.1381966
        %v1472 = vadd.f32 %v1468, %v1471
        %v1473 = vmul.f32 %v1185, -0.4253254
        %v1474 = vsub.f32 %v1470, %v1473
        %v1475 = vmul.f32 %v1210, -0.3618034
        %v1476 = vadd.f32 %v1472, %v1475
        %v1477 = vmul.f32 %v1210, 0.26286554
        %v1478 = vsub.f32 %v1474, %v1477
        %v1480 = vsel %vm339, %v1478, 0
        %1482 = vmatprep.subr.mxu0 0.0
        %1483 = vmatpush1.msra.mxu0 %v333
        %1484 = vmatprep.subr.mxu0 0.0
        %1485 = vmatpush1.msra.mxu0 %v334
        %1486 = vmatprep.subr.mxu0 0.0
        %1487 = vmatpush1.msra.mxu0 %v335
        %1488 = vmatprep.subr.mxu0 0.0
        %1489 = vmatpush1.msra.mxu0 %v336
        %1490 = vmatprep.subr.mxu0 0.0
        %1491 = vmatpush1.msra.mxu0 %v1317
        %1492 = vmatprep.subr.mxu0 0.0
        %1493 = vmatpush1.msra.mxu0 0.0
        %1494 = vmatprep.subr.mxu0 0.0
        %1495 = vmatpush1.msra.mxu0 0.0
        %1496 = vmatprep.subr.mxu0 0.0
        %1497 = vmatpush1.msra.mxu0 0.0
        %1498 = vmatprep.subr.mxu0 0.0
        %1499 = vmatpush1.msra.mxu0 0.0
        %1500 = vmatprep.subr.mxu0 0.0
        %1501 = vmatpush1.msra.mxu0 0.0
        %1502 = vmatprep.subr.mxu0 0.0
        %1503 = vmatpush1.msra.mxu0 0.0
        %1504 = vmatprep.subr.mxu0 0.0
        %1505 = vmatpush1.msra.mxu0 0.0
        %1506 = vmatprep.subr.mxu0 0.0
        %1507 = vmatpush1.msra.mxu0 0.0
        %1508 = vmatprep.subr.mxu0 0.0
        %1509 = vmatpush1.msra.mxu0 0.0
        %1510 = vmatprep.subr.mxu0 0.0
        %1511 = vmatpush1.msra.mxu0 0.0
        %1512 = vmatprep.subr.mxu0 0.0
        %1513 = vmatpush1.msra.mxu0 0.0
        %1514 = vmatprep.subr.mxu0 0.0
        %1515 = vmatpush1.msra.mxu0 0.0
        %1516 = vmatprep.subr.mxu0 0.0
        %1517 = vmatpush1.msra.mxu0 0.0
        %1518 = vmatprep.subr.mxu0 0.0
        %1519 = vmatpush1.msra.mxu0 0.0
        %1520 = vmatprep.subr.mxu0 0.0
        %1521 = vmatpush1.msra.mxu0 0.0
        %1522 = vmatprep.subr.mxu0 0.0
        %1523 = vmatpush1.msra.mxu0 0.0
        %1524 = vmatprep.subr.mxu0 0.0
        %1525 = vmatpush1.msra.mxu0 0.0
        %1526 = vmatprep.subr.mxu0 0.0
        %1527 = vmatpush1.msra.mxu0 0.0
        %1528 = vmatprep.subr.mxu0 0.0
        %1529 = vmatpush1.msra.mxu0 0.0
        %1530 = vmatprep.subr.mxu0 0.0
        %1531 = vmatpush1.msra.mxu0 0.0
        %1532 = vmatprep.subr.mxu0 0.0
        %1533 = vmatpush1.msra.mxu0 0.0
        %1534 = vmatprep.subr.mxu0 0.0
        %1535 = vmatpush1.msra.mxu0 0.0
        %1536 = vmatprep.subr.mxu0 0.0
        %1537 = vmatpush1.msra.mxu0 0.0
        %1538 = vmatprep.subr.mxu0 0.0
        %1539 = vmatpush1.msra.mxu0 0.0
        %1540 = vmatprep.subr.mxu0 0.0
        %1541 = vmatpush1.msra.mxu0 0.0
        %1542 = vmatprep.subr.mxu0 0.0
        %1543 = vmatpush1.msra.mxu0 0.0
        %1544 = vmatprep.subr.mxu0 0.0
        %1545 = vmatpush1.msra.mxu0 0.0
        %1546 = vmatprep.mubr.f32.mxu0 0.0
        %1547 = vmatmul.mubr.f32.gmra.mrb[0].mxu0 %v1480
        %v1548 = vpop.f32.mrb[0].mxu0
        %v1549 = vadd.f32 0.0, %v1548
        %v1550 = vpop.f32.mrb[0].mxu0
        %1551 = vdwg.mxu0
        %v1553 = vsel %vm339, %v1476, 0
        %1555 = vmatprep.subr.mxu0 0.0
        %1556 = vmatpush1.msra.mxu0 %v328
        %1557 = vmatprep.subr.mxu0 0.0
        %1558 = vmatpush1.msra.mxu0 %v329
        %1559 = vmatprep.subr.mxu0 0.0
        %1560 = vmatpush1.msra.mxu0 %v330
        %1561 = vmatprep.subr.mxu0 0.0
        %1562 = vmatpush1.msra.mxu0 %v331
        %1563 = vmatprep.subr.mxu0 0.0
        %1564 = vmatpush1.msra.mxu0 %v1224
        %1565 = vmatprep.subr.mxu0 0.0
        %1566 = vmatpush1.msra.mxu0 0.0
        %1567 = vmatprep.subr.mxu0 0.0
        %1568 = vmatpush1.msra.mxu0 0.0
        %1569 = vmatprep.subr.mxu0 0.0
        %1570 = vmatpush1.msra.mxu0 0.0
        %1571 = vmatprep.subr.mxu0 0.0
        %1572 = vmatpush1.msra.mxu0 0.0
        %1573 = vmatprep.subr.mxu0 0.0
        %1574 = vmatpush1.msra.mxu0 0.0
        %1575 = vmatprep.subr.mxu0 0.0
        %1576 = vmatpush1.msra.mxu0 0.0
        %1577 = vmatprep.subr.mxu0 0.0
        %1578 = vmatpush1.msra.mxu0 0.0
        %1579 = vmatprep.subr.mxu0 0.0
        %1580 = vmatpush1.msra.mxu0 0.0
        %1581 = vmatprep.subr.mxu0 0.0
        %1582 = vmatpush1.msra.mxu0 0.0
        %1583 = vmatprep.subr.mxu0 0.0
        %1584 = vmatpush1.msra.mxu0 0.0
        %1585 = vmatprep.subr.mxu0 0.0
        %1586 = vmatpush1.msra.mxu0 0.0
        %1587 = vmatprep.subr.mxu0 0.0
        %1588 = vmatpush1.msra.mxu0 0.0
        %1589 = vmatprep.subr.mxu0 0.0
        %1590 = vmatpush1.msra.mxu0 0.0
        %1591 = vmatprep.subr.mxu0 0.0
        %1592 = vmatpush1.msra.mxu0 0.0
        %1593 = vmatprep.subr.mxu0 0.0
        %1594 = vmatpush1.msra.mxu0 0.0
        %1595 = vmatprep.subr.mxu0 0.0
        %1596 = vmatpush1.msra.mxu0 0.0
        %1597 = vmatprep.subr.mxu0 0.0
        %1598 = vmatpush1.msra.mxu0 0.0
        %1599 = vmatprep.subr.mxu0 0.0
        %1600 = vmatpush1.msra.mxu0 0.0
        %1601 = vmatprep.subr.mxu0 0.0
        %1602 = vmatpush1.msra.mxu0 0.0
        %1603 = vmatprep.subr.mxu0 0.0
        %1604 = vmatpush1.msra.mxu0 0.0
        %1605 = vmatprep.subr.mxu0 0.0
        %1606 = vmatpush1.msra.mxu0 0.0
        %1607 = vmatprep.subr.mxu0 0.0
        %1608 = vmatpush1.msra.mxu0 0.0
        %1609 = vmatprep.subr.mxu0 0.0
        %1610 = vmatpush1.msra.mxu0 0.0
        %1611 = vmatprep.subr.mxu0 0.0
        %1612 = vmatpush1.msra.mxu0 0.0
        %1613 = vmatprep.subr.mxu0 0.0
        %1614 = vmatpush1.msra.mxu0 0.0
        %1615 = vmatprep.subr.mxu0 0.0
        %1616 = vmatpush1.msra.mxu0 0.0
        %1617 = vmatprep.subr.mxu0 0.0
        %1618 = vmatpush1.msra.mxu0 0.0
        %1619 = vmatprep.mubr.f32.mxu0 0.0
        %1620 = vmatmul.mubr.f32.gmra.mrb[0].mxu0 %v1553
        %v1621 = vpop.f32.mrb[0].mxu0
        %v1622 = vadd.f32 %v1549, %v1621
        %v1623 = vpop.f32.mrb[0].mxu0
        %1624 = vdwg.mxu0
        %s1625 = scalar_lea.vmem %s317, 8 [#allocation11]
        %1626 = vst.msk [vmem:[%s1625] sm:$0xf] %vm1296, %v1622
        %v1627 = vmul.f32 %v1125, -0.26286554
        %v1628 = vmul.f32 %v1160, -0.4253254
        %v1629 = vsub.f32 %v1627, %v1628
        %v1630 = vmul.f32 %v1185, 0.4253254
        %v1631 = vsub.f32 %v1629, %v1630
        %v1632 = vmul.f32 %v1210, -0.26286554
        %v1633 = vsub.f32 %v1631, %v1632
        %v1635 = vsel %vm339, %v1633, 0
        %1637 = vmatprep.subr.mxu0 0.0
        %1638 = vmatpush1.msra.mxu0 %v333
        %1639 = vmatprep.subr.mxu0 0.0
        %1640 = vmatpush1.msra.mxu0 %v334
        %1641 = vmatprep.subr.mxu0 0.0
        %1642 = vmatpush1.msra.mxu0 %v335
        %1643 = vmatprep.subr.mxu0 0.0
        %1644 = vmatpush1.msra.mxu0 %v336
        %1645 = vmatprep.subr.mxu0 0.0
        %1646 = vmatpush1.msra.mxu0 %v1317
        %1647 = vmatprep.subr.mxu0 0.0
        %1648 = vmatpush1.msra.mxu0 0.0
        %1649 = vmatprep.subr.mxu0 0.0
        %1650 = vmatpush1.msra.mxu0 0.0
        %1651 = vmatprep.subr.mxu0 0.0
        %1652 = vmatpush1.msra.mxu0 0.0
        %1653 = vmatprep.subr.mxu0 0.0
        %1654 = vmatpush1.msra.mxu0 0.0
        %1655 = vmatprep.subr.mxu0 0.0
        %1656 = vmatpush1.msra.mxu0 0.0
        %1657 = vmatprep.subr.mxu0 0.0
        %1658 = vmatpush1.msra.mxu0 0.0
        %1659 = vmatprep.subr.mxu0 0.0
        %1660 = vmatpush1.msra.mxu0 0.0
        %1661 = vmatprep.subr.mxu0 0.0
        %1662 = vmatpush1.msra.mxu0 0.0
        %1663 = vmatprep.subr.mxu0 0.0
        %1664 = vmatpush1.msra.mxu0 0.0
        %1665 = vmatprep.subr.mxu0 0.0
        %1666 = vmatpush1.msra.mxu0 0.0
        %1667 = vmatprep.subr.mxu0 0.0
        %1668 = vmatpush1.msra.mxu0 0.0
        %1669 = vmatprep.subr.mxu0 0.0
        %1670 = vmatpush1.msra.mxu0 0.0
        %1671 = vmatprep.subr.mxu0 0.0
        %1672 = vmatpush1.msra.mxu0 0.0
        %1673 = vmatprep.subr.mxu0 0.0
        %1674 = vmatpush1.msra.mxu0 0.0
        %1675 = vmatprep.subr.mxu0 0.0
        %1676 = vmatpush1.msra.mxu0 0.0
        %1677 = vmatprep.subr.mxu0 0.0
        %1678 = vmatpush1.msra.mxu0 0.0
        %1679 = vmatprep.subr.mxu0 0.0
        %1680 = vmatpush1.msra.mxu0 0.0
        %1681 = vmatprep.subr.mxu0 0.0
        %1682 = vmatpush1.msra.mxu0 0.0
        %1683 = vmatprep.subr.mxu0 0.0
        %1684 = vmatpush1.msra.mxu0 0.0
        %1685 = vmatprep.subr.mxu0 0.0
        %1686 = vmatpush1.msra.mxu0 0.0
        %1687 = vmatprep.subr.mxu0 0.0
        %1688 = vmatpush1.msra.mxu0 0.0
        %1689 = vmatprep.subr.mxu0 0.0
        %1690 = vmatpush1.msra.mxu0 0.0
        %1691 = vmatprep.subr.mxu0 0.0
        %1692 = vmatpush1.msra.mxu0 0.0
        %1693 = vmatprep.subr.mxu0 0.0
        %1694 = vmatpush1.msra.mxu0 0.0
        %1695 = vmatprep.subr.mxu0 0.0
        %1696 = vmatpush1.msra.mxu0 0.0
        %1697 = vmatprep.subr.mxu0 0.0
        %1698 = vmatpush1.msra.mxu0 0.0
        %1699 = vmatprep.subr.mxu0 0.0
        %1700 = vmatpush1.msra.mxu0 0.0
        %1701 = vmatprep.mubr.f32.mxu0 0.0
        %1702 = vmatmul.mubr.f32.gmra.mrb[0].mxu0 %v1635
        %v1703 = vpop.f32.mrb[0].mxu0
        %v1704 = vadd.f32 0.0, %v1703
        %v1705 = vpop.f32.mrb[0].mxu0
        %1706 = vdwg.mxu0
        %1707 = vmatprep.subr.mxu0 0.0
        %1708 = vmatpush1.msra.mxu0 %v328
        %1709 = vmatprep.subr.mxu0 0.0
        %1710 = vmatpush1.msra.mxu0 %v329
        %1711 = vmatprep.subr.mxu0 0.0
        %1712 = vmatpush1.msra.mxu0 %v330
        %1713 = vmatprep.subr.mxu0 0.0
        %1714 = vmatpush1.msra.mxu0 %v331
        %1715 = vmatprep.subr.mxu0 0.0
        %1716 = vmatpush1.msra.mxu0 %v1224
        %1717 = vmatprep.subr.mxu0 0.0
        %1718 = vmatpush1.msra.mxu0 0.0
        %1719 = vmatprep.subr.mxu0 0.0
        %1720 = vmatpush1.msra.mxu0 0.0
        %1721 = vmatprep.subr.mxu0 0.0
        %1722 = vmatpush1.msra.mxu0 0.0
        %1723 = vmatprep.subr.mxu0 0.0
        %1724 = vmatpush1.msra.mxu0 0.0
        %1725 = vmatprep.subr.mxu0 0.0
        %1726 = vmatpush1.msra.mxu0 0.0
        %1727 = vmatprep.subr.mxu0 0.0
        %1728 = vmatpush1.msra.mxu0 0.0
        %1729 = vmatprep.subr.mxu0 0.0
        %1730 = vmatpush1.msra.mxu0 0.0
        %1731 = vmatprep.subr.mxu0 0.0
        %1732 = vmatpush1.msra.mxu0 0.0
        %1733 = vmatprep.subr.mxu0 0.0
        %1734 = vmatpush1.msra.mxu0 0.0
        %1735 = vmatprep.subr.mxu0 0.0
        %1736 = vmatpush1.msra.mxu0 0.0
        %1737 = vmatprep.subr.mxu0 0.0
        %1738 = vmatpush1.msra.mxu0 0.0
        %1739 = vmatprep.subr.mxu0 0.0
        %1740 = vmatpush1.msra.mxu0 0.0
        %1741 = vmatprep.subr.mxu0 0.0
        %1742 = vmatpush1.msra.mxu0 0.0
        %1743 = vmatprep.subr.mxu0 0.0
        %1744 = vmatpush1.msra.mxu0 0.0
        %1745 = vmatprep.subr.mxu0 0.0
        %1746 = vmatpush1.msra.mxu0 0.0
        %1747 = vmatprep.subr.mxu0 0.0
        %1748 = vmatpush1.msra.mxu0 0.0
        %1749 = vmatprep.subr.mxu0 0.0
        %1750 = vmatpush1.msra.mxu0 0.0
        %1751 = vmatprep.subr.mxu0 0.0
        %1752 = vmatpush1.msra.mxu0 0.0
        %1753 = vmatprep.subr.mxu0 0.0
        %1754 = vmatpush1.msra.mxu0 0.0
        %1755 = vmatprep.subr.mxu0 0.0
        %1756 = vmatpush1.msra.mxu0 0.0
        %1757 = vmatprep.subr.mxu0 0.0
        %1758 = vmatpush1.msra.mxu0 0.0
        %1759 = vmatprep.subr.mxu0 0.0
        %1760 = vmatpush1.msra.mxu0 0.0
        %1761 = vmatprep.subr.mxu0 0.0
        %1762 = vmatpush1.msra.mxu0 0.0
        %1763 = vmatprep.subr.mxu0 0.0
        %1764 = vmatpush1.msra.mxu0 0.0
        %1765 = vmatprep.subr.mxu0 0.0
        %1766 = vmatpush1.msra.mxu0 0.0
        %1767 = vmatprep.subr.mxu0 0.0
        %1768 = vmatpush1.msra.mxu0 0.0
        %1769 = vmatprep.subr.mxu0 0.0
        %1770 = vmatpush1.msra.mxu0 0.0
        %1771 = vmatprep.mubr.f32.mxu0 0.0
        %1772 = vmatmul.mubr.f32.gmra.mrb[0].mxu0 %v1553
        %v1773 = vpop.f32.mrb[0].mxu0
        %v1774 = vadd.f32 %v1704, %v1773
        %v1775 = vpop.f32.mrb[0].mxu0
        %1776 = vdwg.mxu0
        %s1777 = scalar_lea.vmem %s317, 12 [#allocation11]
        %1778 = vst.msk [vmem:[%s1777] sm:$0xf] %vm1296, %v1774
        %v1779 = vmul.f32 %v1125, -0.4253254
        %v1780 = vmul.f32 %v1160, 0.26286554
        %v1781 = vsub.f32 %v1779, %v1780
        %v1782 = vmul.f32 %v1185, -0.26286554
        %v1783 = vsub.f32 %v1781, %v1782
        %v1784 = vmul.f32 %v1210, -0.4253254
        %v1785 = vsub.f32 %v1783, %v1784
        %v1787 = vsel %vm339, %v1785, 0
        %1789 = vmatprep.subr.mxu0 0.0
        %1790 = vmatpush1.msra.mxu0 %v333
        %1791 = vmatprep.subr.mxu0 0.0
        %1792 = vmatpush1.msra.mxu0 %v334
        %1793 = vmatprep.subr.mxu0 0.0
        %1794 = vmatpush1.msra.mxu0 %v335
        %1795 = vmatprep.subr.mxu0 0.0
        %1796 = vmatpush1.msra.mxu0 %v336
        %1797 = vmatprep.subr.mxu0 0.0
        %1798 = vmatpush1.msra.mxu0 %v1317
        %1799 = vmatprep.subr.mxu0 0.0
        %1800 = vmatpush1.msra.mxu0 0.0
        %1801 = vmatprep.subr.mxu0 0.0
        %1802 = vmatpush1.msra.mxu0 0.0
        %1803 = vmatprep.subr.mxu0 0.0
        %1804 = vmatpush1.msra.mxu0 0.0
        %1805 = vmatprep.subr.mxu0 0.0
        %1806 = vmatpush1.msra.mxu0 0.0
        %1807 = vmatprep.subr.mxu0 0.0
        %1808 = vmatpush1.msra.mxu0 0.0
        %1809 = vmatprep.subr.mxu0 0.0
        %1810 = vmatpush1.msra.mxu0 0.0
        %1811 = vmatprep.subr.mxu0 0.0
        %1812 = vmatpush1.msra.mxu0 0.0
        %1813 = vmatprep.subr.mxu0 0.0
        %1814 = vmatpush1.msra.mxu0 0.0
        %1815 = vmatprep.subr.mxu0 0.0
        %1816 = vmatpush1.msra.mxu0 0.0
        %1817 = vmatprep.subr.mxu0 0.0
        %1818 = vmatpush1.msra.mxu0 0.0
        %1819 = vmatprep.subr.mxu0 0.0
        %1820 = vmatpush1.msra.mxu0 0.0
        %1821 = vmatprep.subr.mxu0 0.0
        %1822 = vmatpush1.msra.mxu0 0.0
        %1823 = vmatprep.subr.mxu0 0.0
        %1824 = vmatpush1.msra.mxu0 0.0
        %1825 = vmatprep.subr.mxu0 0.0
        %1826 = vmatpush1.msra.mxu0 0.0
        %1827 = vmatprep.subr.mxu0 0.0
        %1828 = vmatpush1.msra.mxu0 0.0
        %1829 = vmatprep.subr.mxu0 0.0
        %1830 = vmatpush1.msra.mxu0 0.0
        %1831 = vmatprep.subr.mxu0 0.0
        %1832 = vmatpush1.msra.mxu0 0.0
        %1833 = vmatprep.subr.mxu0 0.0
        %1834 = vmatpush1.msra.mxu0 0.0
        %1835 = vmatprep.subr.mxu0 0.0
        %1836 = vmatpush1.msra.mxu0 0.0
        %1837 = vmatprep.subr.mxu0 0.0
        %1838 = vmatpush1.msra.mxu0 0.0
        %1839 = vmatprep.subr.mxu0 0.0
        %1840 = vmatpush1.msra.mxu0 0.0
        %1841 = vmatprep.subr.mxu0 0.0
        %1842 = vmatpush1.msra.mxu0 0.0
        %1843 = vmatprep.subr.mxu0 0.0
        %1844 = vmatpush1.msra.mxu0 0.0
        %1845 = vmatprep.subr.mxu0 0.0
        %1846 = vmatpush1.msra.mxu0 0.0
        %1847 = vmatprep.subr.mxu0 0.0
        %1848 = vmatpush1.msra.mxu0 0.0
        %1849 = vmatprep.subr.mxu0 0.0
        %1850 = vmatpush1.msra.mxu0 0.0
        %1851 = vmatprep.subr.mxu0 0.0
        %1852 = vmatpush1.msra.mxu0 0.0
        %1853 = vmatprep.mubr.f32.mxu0 0.0
        %1854 = vmatmul.mubr.f32.gmra.mrb[0].mxu0 %v1787
        %v1855 = vpop.f32.mrb[0].mxu0
        %v1856 = vadd.f32 0.0, %v1855
        %v1857 = vpop.f32.mrb[0].mxu0
        %1858 = vdwg.mxu0
        %1859 = vmatprep.subr.mxu0 0.0
        %1860 = vmatpush1.msra.mxu0 %v328
        %1861 = vmatprep.subr.mxu0 0.0
        %1862 = vmatpush1.msra.mxu0 %v329
        %1863 = vmatprep.subr.mxu0 0.0
        %1864 = vmatpush1.msra.mxu0 %v330
        %1865 = vmatprep.subr.mxu0 0.0
        %1866 = vmatpush1.msra.mxu0 %v331
        %1867 = vmatprep.subr.mxu0 0.0
        %1868 = vmatpush1.msra.mxu0 %v1224
        %1869 = vmatprep.subr.mxu0 0.0
        %1870 = vmatpush1.msra.mxu0 0.0
        %1871 = vmatprep.subr.mxu0 0.0
        %1872 = vmatpush1.msra.mxu0 0.0
        %1873 = vmatprep.subr.mxu0 0.0
        %1874 = vmatpush1.msra.mxu0 0.0
        %1875 = vmatprep.subr.mxu0 0.0
        %1876 = vmatpush1.msra.mxu0 0.0
        %1877 = vmatprep.subr.mxu0 0.0
        %1878 = vmatpush1.msra.mxu0 0.0
        %1879 = vmatprep.subr.mxu0 0.0
        %1880 = vmatpush1.msra.mxu0 0.0
        %1881 = vmatprep.subr.mxu0 0.0
        %1882 = vmatpush1.msra.mxu0 0.0
        %1883 = vmatprep.subr.mxu0 0.0
        %1884 = vmatpush1.msra.mxu0 0.0
        %1885 = vmatprep.subr.mxu0 0.0
        %1886 = vmatpush1.msra.mxu0 0.0
        %1887 = vmatprep.subr.mxu0 0.0
        %1888 = vmatpush1.msra.mxu0 0.0
        %1889 = vmatprep.subr.mxu0 0.0
        %1890 = vmatpush1.msra.mxu0 0.0
        %1891 = vmatprep.subr.mxu0 0.0
        %1892 = vmatpush1.msra.mxu0 0.0
        %1893 = vmatprep.subr.mxu0 0.0
        %1894 = vmatpush1.msra.mxu0 0.0
        %1895 = vmatprep.subr.mxu0 0.0
        %1896 = vmatpush1.msra.mxu0 0.0
        %1897 = vmatprep.subr.mxu0 0.0
        %1898 = vmatpush1.msra.mxu0 0.0
        %1899 = vmatprep.subr.mxu0 0.0
        %1900 = vmatpush1.msra.mxu0 0.0
        %1901 = vmatprep.subr.mxu0 0.0
        %1902 = vmatpush1.msra.mxu0 0.0
        %1903 = vmatprep.subr.mxu0 0.0
        %1904 = vmatpush1.msra.mxu0 0.0
        %1905 = vmatprep.subr.mxu0 0.0
        %1906 = vmatpush1.msra.mxu0 0.0
        %1907 = vmatprep.subr.mxu0 0.0
        %1908 = vmatpush1.msra.mxu0 0.0
        %1909 = vmatprep.subr.mxu0 0.0
        %1910 = vmatpush1.msra.mxu0 0.0
        %1911 = vmatprep.subr.mxu0 0.0
        %1912 = vmatpush1.msra.mxu0 0.0
        %1913 = vmatprep.subr.mxu0 0.0
        %1914 = vmatpush1.msra.mxu0 0.0
        %1915 = vmatprep.subr.mxu0 0.0
        %1916 = vmatpush1.msra.mxu0 0.0
        %1917 = vmatprep.subr.mxu0 0.0
        %1918 = vmatpush1.msra.mxu0 0.0
        %1919 = vmatprep.subr.mxu0 0.0
        %1920 = vmatpush1.msra.mxu0 0.0
        %1921 = vmatprep.subr.mxu0 0.0
        %1922 = vmatpush1.msra.mxu0 0.0
        %1923 = vmatprep.mubr.f32.mxu0 0.0
        %1924 = vmatmul.mubr.f32.gmra.mrb[0].mxu0 %v1390
        %v1925 = vpop.f32.mrb[0].mxu0
        %v1926 = vadd.f32 %v1856, %v1925
        %v1927 = vpop.f32.mrb[0].mxu0
        %1928 = vdwg.mxu0
        %s1929 = scalar_lea.vmem %s317, 16 [#allocation11]
        %1930 = vst.msk [vmem:[%s1929] sm:$0xf] %vm1296, %v1926
        %s1931 = sand.u32 %s158, 1
        %s1932 = scalar_lea.sflag [#allocation4], %s1931
        %s1933 = sand.u32 %s158, 1
        %s1934 = smul.addr %s1933, 20
        %s1935 = scalar_lea.vmem [#allocation11], %s1934
        // Predicated region
        $region61: #{tpu_custom_call.1} parent=39 // pred_check
          %p1936 = pneg %p168
        $region62: #{tpu_custom_call.1} parent=39 // pred_check_branch
          %1938 = sbr.rel (%p1936) target = $region64
        $region63: #{tpu_custom_call.1} parent=39 // pred_region
          %s1940 = ssub.s32 320, 320
          %1941 = vsyncadd %s1932, %s1940
          %s1942 = smul.addr %s28, 5
          %s1943 = sadd.s32 %s29, %s1942
          %s1944 = smul.addr %s1943, 64
          %s1945 = scalar_lea.hbm %s5, %s1944
          %s1946 = sshll.u32 %s1935, 4
          %s1947 = int_to_ptr.vmem [resolvable:$true] %s1946
          %1952 = dma.vmem_to_hbm [thread:$0]  %s1947, 320, %s1945, %s1932, 64, 64, 4
        $region64: #{tpu_custom_call.1} parent=39 // pred_fallthru
          _
      $region40: #{tpu_custom_call.1} parent=5 // pred_fallthru
        _
      %p1953 = scmp.le.s32.totalorder 2, %s19
      // Predicated region
      $region65: #{tpu_custom_call.1} parent=5 // pred_check
        %p1954 = pneg %p1953
      $region66: #{tpu_custom_call.1} parent=5 // pred_check_branch
        %1956 = sbr.rel (%p1954) target = $region68
      $region67: #{tpu_custom_call.1} parent=5 // pred_region
        %s1957 = ssub.s32 %s19, 2
        // Predicated region
        $region69: #{tpu_custom_call.1} parent=67 // pred_check
          %p1958 = pneg %p174
        $region70: #{tpu_custom_call.1} parent=67 // pred_check_branch
          %1960 = sbr.rel (%p1958) target = $region72
        $region71: #{tpu_custom_call.1} parent=67 // pred_region
          %s1961 = sand.u32 %s159, 1
          %s1962 = scalar_lea.sflag [#allocation4], %s1961
          %s1963 = sand.u32 %s159, 1
          %s1964 = smul.addr %s1963, 20
          %s1965 = scalar_lea.vmem [#allocation11], %s1964
          %1966 = dma.done %s1962, 320
        $region72: #{tpu_custom_call.1} parent=67 // pred_fallthru
          _
      $region68: #{tpu_custom_call.1} parent=5 // pred_fallthru
        _
    $region6: #{tpu_custom_call.1} parent=1 // loop_footer
      %s23 = sadd.s32 1, %s19
    $region7: #{tpu_custom_call.1} parent=1 // loop_footer_branch
      %18 = sbr.rel target = $region3
    $region8: #{tpu_custom_call.1} parent=1 // loop_exit
      _
    %1967 = vsyncpa [#allocation3], 1
    %s1968 = scalar_lea.sflag [#allocation3], 1
    %1969 = vsyncpa %s1968, 1
    %1970 = vsyncpa [#allocation6], 1
    %1971 = vsyncpa [#allocation9], 1
    %1972 = vsyncpa [#allocation4], 1
    %s1973 = scalar_lea.sflag [#allocation4], 1
    %1974 = vsyncpa %s1973, 1

</llo_original>
